<compile_context>
chip_gen: v7x
topology: tpu7x:2x2x1
jax: 0.10.0
libtpu: 0.0.40
codegen_flags: <defaults>
</compile_context>

<pallas_src>
import jax
import jax.numpy as jnp
import numpy as np
from jax.experimental import pallas as pl
from jax.experimental.pallas import tpu as pltpu


H1, H2, H3 = 1000, 500, 100
N_COLS = 13
BN_EPS = 1e-5
TB_MAX = 256  # batch-tile rows per grid step (fills the 256-wide MXU on v6e/v7x)


# --------------------------------------------------------------------------- #
# Kernel
# --------------------------------------------------------------------------- #
def survnet2_kernel(
    x_ref, cols_ref,
    w1_ref, b1_ref,
    w2a_ref, w2b_ref, b2_ref,
    w3_ref, b3_ref,
    w4_ref, b4_ref,
    out_ref,
):
    # bf16 MXU inputs, f32 accumulation.
    x = x_ref[...].astype(jnp.bfloat16)
    cols = cols_ref[...].astype(jnp.bfloat16)

    # Clinical-column matmul has no data dependence on fc1 -> issue it first so
    # it can be hidden under the fc1 -> ReLU dependency chain.
    hc = jnp.dot(cols, w2b_ref[...], preferred_element_type=jnp.float32)

    # fc1 -> ReLU   (BN1 affine folded into w2a/b2; dropout is eval identity)
    h = jnp.dot(x, w1_ref[...], preferred_element_type=jnp.float32) + b1_ref[...]
    h = jnp.maximum(h, 0.0).astype(jnp.bfloat16)

    # fc2 on cat((x4, cols), dim=1), expressed as a split matmul
    h = jnp.dot(h, w2a_ref[...], preferred_element_type=jnp.float32) + hc + b2_ref[...]
    h = jnp.maximum(h, 0.0).astype(jnp.bfloat16)

    # fc3 -> ReLU   (BN2 folded into w3/b3)
    h = jnp.dot(h, w3_ref[...], preferred_element_type=jnp.float32) + b3_ref[...]
    h = jnp.maximum(h, 0.0).astype(jnp.bfloat16)

    # fc4           (BN3 folded into w4/b4), no activation
    out_ref[...] = (
        jnp.dot(h, w4_ref[...], preferred_element_type=jnp.float32) + b4_ref[...]
    )


# --------------------------------------------------------------------------- #
# Parameter construction (torch-like init) and one-time host-side preparation
# --------------------------------------------------------------------------- #
def _torch_linear_init(key, out_f, in_f):
    """Stand-in for torch.nn.Linear default init (U(-k, k), k = 1/sqrt(in))."""
    kw, kb = jax.random.split(key)
    bound = 1.0 / np.sqrt(in_f)
    w = jax.random.uniform(kw, (out_f, in_f), jnp.float32, -bound, bound)
    b = jax.random.uniform(kb, (out_f,), jnp.float32, -bound, bound)
    return w, b


def make_params(key, in_features, out_features):
    k1, k2, k3, k4 = jax.random.split(key, 4)
    w1, b1 = _torch_linear_init(k1, H1, in_features)
    w2, b2 = _torch_linear_init(k2, H2, H1 + N_COLS)
    w3, b3 = _torch_linear_init(k3, H3, H2)
    w4, b4 = _torch_linear_init(k4, out_features, H3)

    def bn_fold(num_feat):
        gamma = jnp.ones((num_feat,), jnp.float32)
        beta = jnp.zeros((num_feat,), jnp.float32)
        run_mean = jnp.zeros((num_feat,), jnp.float32)
        run_var = jnp.ones((num_feat,), jnp.float32)
        scale = gamma / jnp.sqrt(run_var + BN_EPS)
        shift = beta - run_mean * scale
        return scale, shift

    s1, t1 = bn_fold(H1)
    s2, t2 = bn_fold(H2)
    s3, t3 = bn_fold(H3)

    return dict(
        w1=w1, b1=b1, s1=s1, t1=t1,
        w2=w2, b2=b2, s2=s2, t2=t2,
        w3=w3, b3=b3, s3=s3, t3=t3,
        w4=w4, b4=b4,
    )


def prepare_params(params):
    """One-time prep: transpose weights to (in, out), fold the eval-mode BN affine
    that follows each ReLU into the NEXT layer's weights/bias, cast weights to bf16.
        (relu(fc1)*s1 + t1) @ W2a.T == relu(fc1) @ (s1[:,None]*W2a.T) + t1 @ W2a.T
    (exact in eval mode up to fp32 reassociation)."""
    w1t = params["w1"].T                    # (in, 1000)
    w2at = params["w2"][:, :H1].T           # (1000, 500)
    w2bt = params["w2"][:, H1:].T           # (13, 500)   -- cols path, NOT BN-scaled
    w3t = params["w3"].T                    # (500, 100)
    w4t = params["w4"].T                    # (100, out)

    s1, t1 = params["s1"], params["t1"]
    s2, t2 = params["s2"], params["t2"]
    s3, t3 = params["s3"], params["t3"]

    w2at_f = s1[:, None] * w2at
    b2_f = params["b2"] + t1 @ w2at
    w3t_f = s2[:, None] * w3t
    b3_f = params["b3"] + t2 @ w3t
    w4t_f = s3[:, None] * w4t
    b4_f = params["b4"] + t3 @ w4t

    row = lambda v: v.reshape(1, -1).astype(jnp.float32)
    bf16 = lambda w: w.astype(jnp.bfloat16)
    return dict(
        w1=bf16(w1t), b1=row(params["b1"]),
        w2a=bf16(w2at_f), w2b=bf16(w2bt), b2=row(b2_f),
        w3=bf16(w3t_f), b3=row(b3_f),
        w4=bf16(w4t_f), b4=row(b4_f),
    )


# --------------------------------------------------------------------------- #
# Pallas wrapper
# --------------------------------------------------------------------------- #
@jax.jit
def survnet2_forward(imfeat, cols, prep):
    """imfeat: (B, in_features) f32; cols: (B, 13) f32; prep: prepare_params(...)."""
    B, in_features = imfeat.shape
    out_features = prep["w4"].shape[1]

    tb = B if B <= TB_MAX else TB_MAX
    grid = (pl.cdiv(B, tb),)

    batch_spec = lambda width: pl.BlockSpec((tb, width), lambda i: (i, 0))
    const_spec = lambda shape: pl.BlockSpec(shape, lambda i: (0, 0))  # VMEM-resident

    args = (
        imfeat, cols,
        prep["w1"], prep["b1"],
        prep["w2a"], prep["w2b"], prep["b2"],
        prep["w3"], prep["b3"],
        prep["w4"], prep["b4"],
    )
    in_specs = [batch_spec(in_features), batch_spec(N_COLS)] + [
        const_spec(a.shape) for a in args[2:]
    ]

    return pl.pallas_call(
        survnet2_kernel,
        out_shape=jax.ShapeDtypeStruct((B, out_features), jnp.float32),
        grid=grid,
        in_specs=in_specs,
        out_specs=batch_spec(out_features),
        compiler_params=pltpu.CompilerParams(
            dimension_semantics=("parallel",),
        ),
    )(*args)


# --------------------------------------------------------------------------- #
# Pure-JAX fp32 reference of the original (eval-mode) module
# --------------------------------------------------------------------------- #
def survnet2_reference(imfeat, col_list, params):
    cols = jnp.concatenate(col_list, axis=1)
    h = jnp.maximum(imfeat @ params["w1"].T + params["b1"], 0.0)
    h = h * params["s1"] + params["t1"]
    merged = jnp.concatenate([h, cols], axis=1)
    h = jnp.maximum(merged @ params["w2"].T + params["b2"], 0.0)
    h = h * params["s2"] + params["t2"]
    h = jnp.maximum(h @ params["w3"].T + params["b3"], 0.0)
    h = h * params["s3"] + params["t3"]
    return h @ params["w4"].T + params["b4"]


if __name__ == "__main__":
    B = 8                 # small batch
    IN_FEATURES = 244     # image-feature width implied by the CSV in the script
    OUT_FEATURES = 15     # num_durations (LogisticHazard label transform)

    key = jax.random.PRNGKey(0)
    k_params, k_x, k_cols = jax.random.split(key, 3)

    params = make_params(k_params, IN_FEATURES, OUT_FEATURES)
    prep = prepare_params(params)          # hoisted: transposes / BN folds / bf16 cast

    imfeat = jax.random.normal(k_x, (B, IN_FEATURES), jnp.float32)
    col_keys = jax.random.split(k_cols, N_COLS)
    col_list = tuple(
        jax.random.normal(col_keys[i], (B, 1), jnp.float32) for i in range(N_COLS)
    )
    cols = jnp.concatenate(col_list, axis=1)   # single (B, 13) array, built once

    out = survnet2_forward(imfeat, cols, prep)
    out = jax.block_until_ready(out)

    ref = survnet2_reference(imfeat, col_list, params)
    # Tolerance relaxed vs. the fp32 reference because weights/activations feed the
    # MXU in bf16 (f32 accumulation); BN folding itself is exact in eval mode.
    np.testing.assert_allclose(np.asarray(out), np.asarray(ref), rtol=5e-2, atol=1e-2)

    assert out.shape == (B, OUT_FEATURES) and out.dtype == jnp.float32
    print("KERNEL_OK")
</pallas_src>

<mosaic_0001>
module attributes {stable_mosaic.version = 11 : i64} {
  func.func @survnet2_kernel(%arg0: i32, %arg1: memref<8x244xf32, #tpu.memory_space<vmem>>, %arg2: memref<8x13xf32, #tpu.memory_space<vmem>>, %arg3: memref<244x1000xbf16, #tpu.memory_space<vmem>>, %arg4: memref<1x1000xf32, #tpu.memory_space<vmem>>, %arg5: memref<1000x500xbf16, #tpu.memory_space<vmem>>, %arg6: memref<13x500xbf16, #tpu.memory_space<vmem>>, %arg7: memref<1x500xf32, #tpu.memory_space<vmem>>, %arg8: memref<500x100xbf16, #tpu.memory_space<vmem>>, %arg9: memref<1x100xf32, #tpu.memory_space<vmem>>, %arg10: memref<100x15xbf16, #tpu.memory_space<vmem>>, %arg11: memref<1x15xf32, #tpu.memory_space<vmem>>, %arg12: memref<8x15xf32, #tpu.memory_space<vmem>>) attributes {dimension_semantics = [#tpu.dimension_semantics<parallel>], iteration_bounds = array<i64: 1>, scalar_prefetch = 0 : i64, scratch_operands = 0 : i64, tpu.core_type = #tpu.core_type<tc>, window_params = [{transform_indices = @transform_0, window_bounds = array<i64: 8, 244>}, {transform_indices = @transform_1, window_bounds = array<i64: 8, 13>}, {pipeline_mode = #tpu.pipeline_mode<synchronous>, transform_indices = @transform_2, window_bounds = array<i64: 244, 1000>}, {pipeline_mode = #tpu.pipeline_mode<synchronous>, transform_indices = @transform_3, window_bounds = array<i64: 1, 1000>}, {pipeline_mode = #tpu.pipeline_mode<synchronous>, transform_indices = @transform_4, window_bounds = array<i64: 1000, 500>}, {pipeline_mode = #tpu.pipeline_mode<synchronous>, transform_indices = @transform_5, window_bounds = array<i64: 13, 500>}, {pipeline_mode = #tpu.pipeline_mode<synchronous>, transform_indices = @transform_6, window_bounds = array<i64: 1, 500>}, {pipeline_mode = #tpu.pipeline_mode<synchronous>, transform_indices = @transform_7, window_bounds = array<i64: 500, 100>}, {pipeline_mode = #tpu.pipeline_mode<synchronous>, transform_indices = @transform_8, window_bounds = array<i64: 1, 100>}, {pipeline_mode = #tpu.pipeline_mode<synchronous>, transform_indices = @transform_9, window_bounds = array<i64: 100, 15>}, {pipeline_mode = #tpu.pipeline_mode<synchronous>, transform_indices = @transform_10, window_bounds = array<i64: 1, 15>}, {transform_indices = @transform_11, window_bounds = array<i64: 8, 15>}]} {
    %c0 = arith.constant 0 : index
    %c0_0 = arith.constant 0 : index
    %0 = vector.load %arg1[%c0, %c0_0] : memref<8x244xf32, #tpu.memory_space<vmem>>, vector<8x244xf32>
    %1 = arith.truncf %0 : vector<8x244xf32> to vector<8x244xbf16>
    %c0_1 = arith.constant 0 : index
    %c0_2 = arith.constant 0 : index
    %2 = vector.load %arg2[%c0_1, %c0_2] : memref<8x13xf32, #tpu.memory_space<vmem>>, vector<8x13xf32>
    %3 = arith.truncf %2 : vector<8x13xf32> to vector<8x13xbf16>
    %c0_3 = arith.constant 0 : index
    %c0_4 = arith.constant 0 : index
    %4 = vector.load %arg6[%c0_3, %c0_4] : memref<13x500xbf16, #tpu.memory_space<vmem>>, vector<13x500xbf16>
    %cst = arith.constant dense<0.000000e+00> : vector<8x500xf32>
    %5 = tpu.matmul %3, %4, %cst {dimension_numbers = #tpu.dot_dimension_numbers<[1], [0], [0], [1], [0, 0, 1, 1], [], []>} : vector<8x13xbf16>, vector<13x500xbf16>, vector<8x500xf32> -> vector<8x500xf32>
    %c0_5 = arith.constant 0 : index
    %c0_6 = arith.constant 0 : index
    %6 = vector.load %arg3[%c0_5, %c0_6] : memref<244x1000xbf16, #tpu.memory_space<vmem>>, vector<244x1000xbf16>
    %cst_7 = arith.constant dense<0.000000e+00> : vector<8x1000xf32>
    %7 = tpu.matmul %1, %6, %cst_7 {dimension_numbers = #tpu.dot_dimension_numbers<[1], [0], [0], [1], [0, 0, 1, 1], [], []>} : vector<8x244xbf16>, vector<244x1000xbf16>, vector<8x1000xf32> -> vector<8x1000xf32>
    %c0_8 = arith.constant 0 : index
    %c0_9 = arith.constant 0 : index
    %8 = vector.load %arg4[%c0_8, %c0_9] : memref<1x1000xf32, #tpu.memory_space<vmem>>, vector<1x1000xf32>
    %9 = vector.broadcast %8 : vector<1x1000xf32> to vector<8x1000xf32>
    %10 = arith.addf %7, %9 : vector<8x1000xf32>
    %cst_10 = arith.constant 0.000000e+00 : f32
    %11 = vector.broadcast %cst_10 : f32 to vector<8x1000xf32>
    %12 = arith.maximumf %10, %11 : vector<8x1000xf32>
    %13 = arith.truncf %12 : vector<8x1000xf32> to vector<8x1000xbf16>
    %c0_11 = arith.constant 0 : index
    %c0_12 = arith.constant 0 : index
    %14 = vector.load %arg5[%c0_11, %c0_12] : memref<1000x500xbf16, #tpu.memory_space<vmem>>, vector<1000x500xbf16>
    %cst_13 = arith.constant dense<0.000000e+00> : vector<8x500xf32>
    %15 = tpu.matmul %13, %14, %cst_13 {dimension_numbers = #tpu.dot_dimension_numbers<[1], [0], [0], [1], [0, 0, 1, 1], [], []>} : vector<8x1000xbf16>, vector<1000x500xbf16>, vector<8x500xf32> -> vector<8x500xf32>
    %16 = arith.addf %15, %5 : vector<8x500xf32>
    %c0_14 = arith.constant 0 : index
    %c0_15 = arith.constant 0 : index
    %17 = vector.load %arg7[%c0_14, %c0_15] : memref<1x500xf32, #tpu.memory_space<vmem>>, vector<1x500xf32>
    %18 = vector.broadcast %17 : vector<1x500xf32> to vector<8x500xf32>
    %19 = arith.addf %16, %18 : vector<8x500xf32>
    %cst_16 = arith.constant 0.000000e+00 : f32
    %20 = vector.broadcast %cst_16 : f32 to vector<8x500xf32>
    %21 = arith.maximumf %19, %20 : vector<8x500xf32>
    %22 = arith.truncf %21 : vector<8x500xf32> to vector<8x500xbf16>
    %c0_17 = arith.constant 0 : index
    %c0_18 = arith.constant 0 : index
    %23 = vector.load %arg8[%c0_17, %c0_18] : memref<500x100xbf16, #tpu.memory_space<vmem>>, vector<500x100xbf16>
    %cst_19 = arith.constant dense<0.000000e+00> : vector<8x100xf32>
    %24 = tpu.matmul %22, %23, %cst_19 {dimension_numbers = #tpu.dot_dimension_numbers<[1], [0], [0], [1], [0, 0, 1, 1], [], []>} : vector<8x500xbf16>, vector<500x100xbf16>, vector<8x100xf32> -> vector<8x100xf32>
    %c0_20 = arith.constant 0 : index
    %c0_21 = arith.constant 0 : index
    %25 = vector.load %arg9[%c0_20, %c0_21] : memref<1x100xf32, #tpu.memory_space<vmem>>, vector<1x100xf32>
    %26 = vector.broadcast %25 : vector<1x100xf32> to vector<8x100xf32>
    %27 = arith.addf %24, %26 : vector<8x100xf32>
    %cst_22 = arith.constant 0.000000e+00 : f32
    %28 = vector.broadcast %cst_22 : f32 to vector<8x100xf32>
    %29 = arith.maximumf %27, %28 : vector<8x100xf32>
    %30 = arith.truncf %29 : vector<8x100xf32> to vector<8x100xbf16>
    %c0_23 = arith.constant 0 : index
    %c0_24 = arith.constant 0 : index
    %31 = vector.load %arg10[%c0_23, %c0_24] : memref<100x15xbf16, #tpu.memory_space<vmem>>, vector<100x15xbf16>
    %cst_25 = arith.constant dense<0.000000e+00> : vector<8x15xf32>
    %32 = tpu.matmul %30, %31, %cst_25 {dimension_numbers = #tpu.dot_dimension_numbers<[1], [0], [0], [1], [0, 0, 1, 1], [], []>} : vector<8x100xbf16>, vector<100x15xbf16>, vector<8x15xf32> -> vector<8x15xf32>
    %c0_26 = arith.constant 0 : index
    %c0_27 = arith.constant 0 : index
    %33 = vector.load %arg11[%c0_26, %c0_27] : memref<1x15xf32, #tpu.memory_space<vmem>>, vector<1x15xf32>
    %34 = vector.broadcast %33 : vector<1x15xf32> to vector<8x15xf32>
    %35 = arith.addf %32, %34 : vector<8x15xf32>
    %c0_28 = arith.constant 0 : index
    %c0_29 = arith.constant 0 : index
    %36 = vector.load %arg12[%c0_28, %c0_29] : memref<8x15xf32, #tpu.memory_space<vmem>>, vector<8x15xf32>
    tpu.vector_store %arg12[%c0_28, %c0_29], %35 {strides = array<i32>} : memref<8x15xf32, #tpu.memory_space<vmem>>, vector<8x15xf32>,
    return
  }
  func.func @transform_0(%arg0: i32) -> (i32, i32) {
    %c0_i32 = arith.constant 0 : i32
    %c0_i32_0 = arith.constant 0 : i32
    return %arg0, %c0_i32 : i32, i32
  }
  func.func @transform_1(%arg0: i32) -> (i32, i32) {
    %c0_i32 = arith.constant 0 : i32
    %c0_i32_0 = arith.constant 0 : i32
    return %arg0, %c0_i32 : i32, i32
  }
  func.func @transform_2(%arg0: i32) -> (i32, i32) {
    %c0_i32 = arith.constant 0 : i32
    %c0_i32_0 = arith.constant 0 : i32
    %c0_i32_1 = arith.constant 0 : i32
    return %c0_i32, %c0_i32_0 : i32, i32
  }
  func.func @transform_3(%arg0: i32) -> (i32, i32) {
    %c0_i32 = arith.constant 0 : i32
    %c0_i32_0 = arith.constant 0 : i32
    %c0_i32_1 = arith.constant 0 : i32
    return %c0_i32, %c0_i32_0 : i32, i32
  }
  func.func @transform_4(%arg0: i32) -> (i32, i32) {
    %c0_i32 = arith.constant 0 : i32
    %c0_i32_0 = arith.constant 0 : i32
    %c0_i32_1 = arith.constant 0 : i32
    return %c0_i32, %c0_i32_0 : i32, i32
  }
  func.func @transform_5(%arg0: i32) -> (i32, i32) {
    %c0_i32 = arith.constant 0 : i32
    %c0_i32_0 = arith.constant 0 : i32
    %c0_i32_1 = arith.constant 0 : i32
    return %c0_i32, %c0_i32_0 : i32, i32
  }
  func.func @transform_6(%arg0: i32) -> (i32, i32) {
    %c0_i32 = arith.constant 0 : i32
    %c0_i32_0 = arith.constant 0 : i32
    %c0_i32_1 = arith.constant 0 : i32
    return %c0_i32, %c0_i32_0 : i32, i32
  }
  func.func @transform_7(%arg0: i32) -> (i32, i32) {
    %c0_i32 = arith.constant 0 : i32
    %c0_i32_0 = arith.constant 0 : i32
    %c0_i32_1 = arith.constant 0 : i32
    return %c0_i32, %c0_i32_0 : i32, i32
  }
  func.func @transform_8(%arg0: i32) -> (i32, i32) {
    %c0_i32 = arith.constant 0 : i32
    %c0_i32_0 = arith.constant 0 : i32
    %c0_i32_1 = arith.constant 0 : i32
    return %c0_i32, %c0_i32_0 : i32, i32
  }
  func.func @transform_9(%arg0: i32) -> (i32, i32) {
    %c0_i32 = arith.constant 0 : i32
    %c0_i32_0 = arith.constant 0 : i32
    %c0_i32_1 = arith.constant 0 : i32
    return %c0_i32, %c0_i32_0 : i32, i32
  }
  func.func @transform_10(%arg0: i32) -> (i32, i32) {
    %c0_i32 = arith.constant 0 : i32
    %c0_i32_0 = arith.constant 0 : i32
    %c0_i32_1 = arith.constant 0 : i32
    return %c0_i32, %c0_i32_0 : i32, i32
  }
  func.func @transform_11(%arg0: i32) -> (i32, i32) {
    %c0_i32 = arith.constant 0 : i32
    %c0_i32_0 = arith.constant 0 : i32
    return %arg0, %c0_i32 : i32, i32
  }
}

</mosaic_0001>

<llo_original>
// kernel: survnet2_forward.1
$region0: #{survnet2_forward.1}
  #allocation0 [shape = 'u32[]', space=smem, size = 0x4, offset = 0x4, fixed_abs, tag = 'smem constant byte address 0x4 - core index']
  #allocation1 [shape = 'u32[144,128]{1,0:T(1,128)}', space=vmem, size = 0x12000, scoped, tag = 'internal scratch']
  %s0 = inlined_call_operand.vmem [shape: f32[8,244], index: 0, kind: input, shape index: {}]
  %s1 = inlined_call_operand.vmem [shape: f32[8,13], index: 1, kind: input, shape index: {}]
  %s2 = inlined_call_operand.hbm [shape: bf16[244,1000], index: 2, kind: input, shape index: {}]
  %s3 = inlined_call_operand.vmem [shape: f32[1,1000], index: 3, kind: input, shape index: {}]
  %s4 = inlined_call_operand.hbm [shape: bf16[1000,500], index: 4, kind: input, shape index: {}]
  %s5 = inlined_call_operand.vmem [shape: bf16[13,500], index: 5, kind: input, shape index: {}]
  %s6 = inlined_call_operand.vmem [shape: f32[1,500], index: 6, kind: input, shape index: {}]
  %s7 = inlined_call_operand.vmem [shape: bf16[500,100], index: 7, kind: input, shape index: {}]
  %s8 = inlined_call_operand.vmem [shape: f32[1,100], index: 8, kind: input, shape index: {}]
  %s9 = inlined_call_operand.vmem [shape: bf16[100,15], index: 9, kind: input, shape index: {}]
  %s10 = inlined_call_operand.vmem [shape: f32[1,15], index: 10, kind: input, shape index: {}]
  %s11 = inlined_call_operand.hbm [shape: f32[8,15], index: 11, kind: output, shape index: {}]
  %s12 = sld [smem:[#allocation0]]
  $region62: #{survnet2_forward.1} parent=0
    _
  %s14 = ssub.s32 1, %s12
  %s15 = scalar_select 0, %s14, %s12
  $region1: #{survnet2_forward.1} parent=0
    #allocation2 [shape = 'u8[507904]{0}', space=vmem, size = 0x7c000, scoped, tag = 'input window, operand 2, single buffered']
    #allocation3 [shape = 's32[1]{0}', space=sflag, size = 0x4, scoped, tag = 'scoped memory for survnet2_forward.1']
    #allocation4 [shape = 's32[1]{0}', space=sflag, size = 0x4, scoped, tag = 'scoped memory for survnet2_forward.1']
    #allocation5 [shape = 'u8[1024000]{0}', space=vmem, size = 0xfa000, scoped, tag = 'input window, operand 4, single buffered']
    #allocation6 [shape = 's32[1]{0}', space=sflag, size = 0x4, scoped, tag = 'scoped memory for survnet2_forward.1']
    #allocation7 [shape = 'u8[4096]{0}', space=vmem, size = 0x1000, scoped, tag = 'output window, operand 0, single buffered']
    %16 = vsyncpa [#allocation3], 0
    %17 = vsyncpa [#allocation6], 0
    %18 = vsyncpa [#allocation4], 0
    // Predicated region
    $region2: #{survnet2_forward.1} parent=1 // pred_check
      _
    $region3: #{survnet2_forward.1} parent=1 // pred_check_branch
      %20 = sbr.rel (0) target = $region5
    $region4: #{survnet2_forward.1} parent=1 // pred_region
      _
    $region5: #{survnet2_forward.1} parent=1 // pred_fallthru
      _
    // Predicated region
    $region6: #{survnet2_forward.1} parent=1 // pred_check
      _
    $region7: #{survnet2_forward.1} parent=1 // pred_check_branch
      %22 = sbr.rel (0) target = $region9
    $region8: #{survnet2_forward.1} parent=1 // pred_region
      _
    $region9: #{survnet2_forward.1} parent=1 // pred_fallthru
      _
    // Predicated region
    $region10: #{survnet2_forward.1} parent=1 // pred_check
      _
    $region11: #{survnet2_forward.1} parent=1 // pred_check_branch
      %24 = sbr.rel (0) target = $region13
    $region12: #{survnet2_forward.1} parent=1 // pred_region
      %s26 = ssub.s32 15872, 15872
      %27 = vsyncadd [#allocation3], %s26
      %s28 = sshll.u32 [#allocation2], 4
      %s29 = int_to_ptr.vmem [resolvable:$true] %s28
      %34 = dma.hbm_to_vmem [thread:$0]  %s2, 15872, %s29, [#allocation3], 512, 512, 32
    $region13: #{survnet2_forward.1} parent=1 // pred_fallthru
      _
    // Predicated region
    $region14: #{survnet2_forward.1} parent=1 // pred_check
      _
    $region15: #{survnet2_forward.1} parent=1 // pred_check_branch
      %36 = sbr.rel (0) target = $region17
    $region16: #{survnet2_forward.1} parent=1 // pred_region
      _
    $region17: #{survnet2_forward.1} parent=1 // pred_fallthru
      _
    // Predicated region
    $region18: #{survnet2_forward.1} parent=1 // pred_check
      _
    $region19: #{survnet2_forward.1} parent=1 // pred_check_branch
      %38 = sbr.rel (0) target = $region21
    $region20: #{survnet2_forward.1} parent=1 // pred_region
      %s40 = ssub.s32 32000, 32000
      %41 = vsyncadd [#allocation6], %s40
      %s42 = sshll.u32 [#allocation5], 4
      %s43 = int_to_ptr.vmem [resolvable:$true] %s42
      %48 = dma.hbm_to_vmem [thread:$0]  %s4, 32000, %s43, [#allocation6], 256, 256, 16
    $region21: #{survnet2_forward.1} parent=1 // pred_fallthru
      _
    // Predicated region
    $region22: #{survnet2_forward.1} parent=1 // pred_check
      _
    $region23: #{survnet2_forward.1} parent=1 // pred_check_branch
      %50 = sbr.rel (0) target = $region25
    $region24: #{survnet2_forward.1} parent=1 // pred_region
      _
    $region25: #{survnet2_forward.1} parent=1 // pred_fallthru
      _
    // Predicated region
    $region26: #{survnet2_forward.1} parent=1 // pred_check
      _
    $region27: #{survnet2_forward.1} parent=1 // pred_check_branch
      %52 = sbr.rel (0) target = $region29
    $region28: #{survnet2_forward.1} parent=1 // pred_region
      _
    $region29: #{survnet2_forward.1} parent=1 // pred_fallthru
      _
    // Predicated region
    $region30: #{survnet2_forward.1} parent=1 // pred_check
      _
    $region31: #{survnet2_forward.1} parent=1 // pred_check_branch
      %54 = sbr.rel (0) target = $region33
    $region32: #{survnet2_forward.1} parent=1 // pred_region
      _
    $region33: #{survnet2_forward.1} parent=1 // pred_fallthru
      _
    // Predicated region
    $region34: #{survnet2_forward.1} parent=1 // pred_check
      _
    $region35: #{survnet2_forward.1} parent=1 // pred_check_branch
      %56 = sbr.rel (0) target = $region37
    $region36: #{survnet2_forward.1} parent=1 // pred_region
      _
    $region37: #{survnet2_forward.1} parent=1 // pred_fallthru
      _
    // Predicated region
    $region38: #{survnet2_forward.1} parent=1 // pred_check
      _
    $region39: #{survnet2_forward.1} parent=1 // pred_check_branch
      %58 = sbr.rel (0) target = $region41
    $region40: #{survnet2_forward.1} parent=1 // pred_region
      _
    $region41: #{survnet2_forward.1} parent=1 // pred_fallthru
      _
    // Predicated region
    $region42: #{survnet2_forward.1} parent=1 // pred_check
      _
    $region43: #{survnet2_forward.1} parent=1 // pred_check_branch
      %60 = sbr.rel (0) target = $region45
    $region44: #{survnet2_forward.1} parent=1 // pred_region
      _
    $region45: #{survnet2_forward.1} parent=1 // pred_fallthru
      _
    // Predicated region
    $region46: #{survnet2_forward.1} parent=1 // pred_check
      _
    $region47: #{survnet2_forward.1} parent=1 // pred_check_branch
      %62 = sbr.rel (0) target = $region49
    $region48: #{survnet2_forward.1} parent=1 // pred_region
      %63 = dma.done [#allocation3], 15872
    $region49: #{survnet2_forward.1} parent=1 // pred_fallthru
      _
    // Predicated region
    $region50: #{survnet2_forward.1} parent=1 // pred_check
      _
    $region51: #{survnet2_forward.1} parent=1 // pred_check_branch
      %65 = sbr.rel (0) target = $region53
    $region52: #{survnet2_forward.1} parent=1 // pred_region
      %66 = dma.done [#allocation6], 32000
    $region53: #{survnet2_forward.1} parent=1 // pred_fallthru
      _
    %v68 = vld [vmem:[%s0] sm:$0xff]
    %v69 = vld [vmem:[%s0 + $0x8] sm:$0xff]
    %v70 = vpack.c.bf16 %v68, %v68
    %v71 = vpack.c.bf16 %v69, %v69
    %v72 = vld [vmem:[%s1] sm:$0xff]
    %v73 = vpack.c.bf16 %v72, %v72
    %v74 = vld [vmem:[%s5] sm:$0xff]
    %v75 = vld [vmem:[%s5 + $0x8] sm:$0xff]
    %v76 = vld [vmem:[%s5 + $0x10] sm:$0x77]
    %v77 = vld [vmem:[%s5 + $0x18] sm:$0x77]
    %v82 = vunpack.c.l.b16 %v74
    %v83 = vunpack.c.h.b16 %v74
    %v84 = vunpack.c.l.b16 %v75
    %v85 = vunpack.c.h.b16 %v75
    %v86 = vunpack.c.l.b16 %v76
    %v87 = vunpack.c.h.b16 %v76
    %v88 = vunpack.c.l.b16 %v77
    %v89 = vunpack.c.h.b16 %v77
    %v90 = vpack.c.b16 %v86, %v82
    %v91 = vpack.c.b16 %v87, %v83
    %v92 = vpack.c.b16 %v88, %v84
    %v93 = vpack.c.b16 %v89, %v85
    %vm94 = vcmask 105472
    %v96 = vsel %vm94, %v73, 0
    %vm98 = vcmask 1045504
    %vm99 = vcmask 1046528
    %v100 = vsel %vm98, 4294967295, 65535
    %v101 = vsel %vm99, %v100, 0
    %v103 = vand.u32 %v90, %v101
    %v106 = vand.u32 %v91, %v101
    %v109 = vand.u32 %v92, %v101
    %v112 = vand.u32 %v93, %v101
    %114 = vmatprep.subr.bf16.mxu0 %v106
    %115 = vmatpush1.bf16.msra.mxu0 %v103
    %116 = vmatprep.subr.bf16.mxu0 0
    %117 = vmatpush1.bf16.msra.mxu0 0
    %118 = vmatprep.subr.bf16.mxu0 0
    %119 = vmatpush1.bf16.msra.mxu0 0
    %120 = vmatprep.subr.bf16.mxu0 0
    %121 = vmatpush1.bf16.msra.mxu0 0
    %122 = vmatprep.subr.bf16.mxu0 0
    %123 = vmatpush1.bf16.msra.mxu0 0
    %124 = vmatprep.subr.bf16.mxu0 0
    %125 = vmatpush1.bf16.msra.mxu0 0
    %126 = vmatprep.subr.bf16.mxu0 0
    %127 = vmatpush1.bf16.msra.mxu0 0
    %128 = vmatprep.subr.bf16.mxu0 0
    %129 = vmatpush1.bf16.msra.mxu0 0
    %130 = vmatprep.subr.bf16.mxu0 0
    %131 = vmatpush1.bf16.msra.mxu0 0
    %132 = vmatprep.subr.bf16.mxu0 0
    %133 = vmatpush1.bf16.msra.mxu0 0
    %134 = vmatprep.subr.bf16.mxu0 0
    %135 = vmatpush1.bf16.msra.mxu0 0
    %136 = vmatprep.subr.bf16.mxu0 0
    %137 = vmatpush1.bf16.msra.mxu0 0
    %138 = vmatprep.subr.bf16.mxu0 0
    %139 = vmatpush1.bf16.msra.mxu0 0
    %140 = vmatprep.subr.bf16.mxu0 0
    %141 = vmatpush1.bf16.msra.mxu0 0
    %142 = vmatprep.subr.bf16.mxu0 0
    %143 = vmatpush1.bf16.msra.mxu0 0
    %144 = vmatprep.subr.bf16.mxu0 0
    %145 = vmatpush1.bf16.msra.mxu0 0
    %146 = vmatprep.mubr.bf16.mxu0 0
    %147 = vmatmul.mubr.bf16.gmra.mrb[0].mxu0 %v96
    %v148 = vpop.f32.mrb[0].mxu0
    %v149 = vadd.f32 0.0, %v148
    %v150 = vpop.f32.mrb[0].mxu0
    %v151 = vadd.f32 0.0, %v150
    %v152 = vpop.f32.mrb[0].mxu0
    %v153 = vpop.f32.mrb[0].mxu0
    %154 = vdwg.mxu0
    %155 = vmatprep.subr.bf16.mxu0 %v112
    %156 = vmatpush1.bf16.msra.mxu0 %v109
    %157 = vmatprep.subr.bf16.mxu0 0
    %158 = vmatpush1.bf16.msra.mxu0 0
    %159 = vmatprep.subr.bf16.mxu0 0
    %160 = vmatpush1.bf16.msra.mxu0 0
    %161 = vmatprep.subr.bf16.mxu0 0
    %162 = vmatpush1.bf16.msra.mxu0 0
    %163 = vmatprep.subr.bf16.mxu0 0
    %164 = vmatpush1.bf16.msra.mxu0 0
    %165 = vmatprep.subr.bf16.mxu0 0
    %166 = vmatpush1.bf16.msra.mxu0 0
    %167 = vmatprep.subr.bf16.mxu0 0
    %168 = vmatpush1.bf16.msra.mxu0 0
    %169 = vmatprep.subr.bf16.mxu0 0
    %170 = vmatpush1.bf16.msra.mxu0 0
    %171 = vmatprep.subr.bf16.mxu0 0
    %172 = vmatpush1.bf16.msra.mxu0 0
    %173 = vmatprep.subr.bf16.mxu0 0
    %174 = vmatpush1.bf16.msra.mxu0 0
    %175 = vmatprep.subr.bf16.mxu0 0
    %176 = vmatpush1.bf16.msra.mxu0 0
    %177 = vmatprep.subr.bf16.mxu0 0
    %178 = vmatpush1.bf16.msra.mxu0 0
    %179 = vmatprep.subr.bf16.mxu0 0
    %180 = vmatpush1.bf16.msra.mxu0 0
    %181 = vmatprep.subr.bf16.mxu0 0
    %182 = vmatpush1.bf16.msra.mxu0 0
    %183 = vmatprep.subr.bf16.mxu0 0
    %184 = vmatpush1.bf16.msra.mxu0 0
    %185 = vmatprep.subr.bf16.mxu0 0
    %186 = vmatpush1.bf16.msra.mxu0 0
    %187 = vmatprep.mubr.bf16.mxu0 0
    %188 = vmatmul.mubr.bf16.gmra.mrb[0].mxu0 %v96
    %v189 = vpop.f32.mrb[0].mxu0
    %v190 = vadd.f32 0.0, %v189
    %v191 = vpop.f32.mrb[0].mxu0
    %v192 = vadd.f32 0.0, %v191
    %v193 = vpop.f32.mrb[0].mxu0
    %v194 = vpop.f32.mrb[0].mxu0
    %195 = vdwg.mxu0
    %v196 = vld [vmem:[#allocation2] sm:$0xff]
    %v197 = vld [vmem:[#allocation2 + $0x8] sm:$0xff]
    %v198 = vld [vmem:[#allocation2 + $0x10] sm:$0xff]
    %v199 = vld [vmem:[#allocation2 + $0x18] sm:$0xff]
    %v200 = vld [vmem:[#allocation2 + $0x20] sm:$0xff]
    %v201 = vld [vmem:[#allocation2 + $0x28] sm:$0xff]
    %v202 = vld [vmem:[#allocation2 + $0x30] sm:$0xff]
    %v203 = vld [vmem:[#allocation2 + $0x38] sm:$0xff]
    %v204 = vld [vmem:[#allocation2 + $0x40] sm:$0xff]
    %v205 = vld [vmem:[#allocation2 + $0x48] sm:$0xff]
    %v206 = vld [vmem:[#allocation2 + $0x50] sm:$0xff]
    %v207 = vld [vmem:[#allocation2 + $0x58] sm:$0xff]
    %v208 = vld [vmem:[#allocation2 + $0x60] sm:$0xff]
    %v209 = vld [vmem:[#allocation2 + $0x68] sm:$0xff]
    %v210 = vld [vmem:[#allocation2 + $0x70] sm:$0xff]
    %v211 = vld [vmem:[#allocation2 + $0x78] sm:$0xff]
    %v212 = vld [vmem:[#allocation2 + $0x80] sm:$0xff]
    %v213 = vld [vmem:[#allocation2 + $0x88] sm:$0xff]
    %v214 = vld [vmem:[#allocation2 + $0x90] sm:$0xff]
    %v215 = vld [vmem:[#allocation2 + $0x98] sm:$0xff]
    %v216 = vld [vmem:[#allocation2 + $0xa0] sm:$0xff]
    %v217 = vld [vmem:[#allocation2 + $0xa8] sm:$0xff]
    %v218 = vld [vmem:[#allocation2 + $0xb0] sm:$0xff]
    %v219 = vld [vmem:[#allocation2 + $0xb8] sm:$0xff]
    %v220 = vld [vmem:[#allocation2 + $0xc0] sm:$0xff]
    %v221 = vld [vmem:[#allocation2 + $0xc8] sm:$0xff]
    %v222 = vld [vmem:[#allocation2 + $0xd0] sm:$0xff]
    %v223 = vld [vmem:[#allocation2 + $0xd8] sm:$0xff]
    %v224 = vld [vmem:[#allocation2 + $0xe0] sm:$0xff]
    %v225 = vld [vmem:[#allocation2 + $0xe8] sm:$0xff]
    %v226 = vld [vmem:[#allocation2 + $0xf0] sm:$0xff]
    %v227 = vld [vmem:[#allocation2 + $0xf8] sm:$0xff]
    %v228 = vld [vmem:[#allocation2 + $0x100] sm:$0xff]
    %v229 = vld [vmem:[#allocation2 + $0x108] sm:$0xff]
    %v230 = vld [vmem:[#allocation2 + $0x110] sm:$0xff]
    %v231 = vld [vmem:[#allocation2 + $0x118] sm:$0xff]
    %v232 = vld [vmem:[#allocation2 + $0x120] sm:$0xff]
    %v233 = vld [vmem:[#allocation2 + $0x128] sm:$0xff]
    %v234 = vld [vmem:[#allocation2 + $0x130] sm:$0xff]
    %v235 = vld [vmem:[#allocation2 + $0x138] sm:$0xff]
    %v236 = vld [vmem:[#allocation2 + $0x140] sm:$0xff]
    %v237 = vld [vmem:[#allocation2 + $0x148] sm:$0xff]
    %v238 = vld [vmem:[#allocation2 + $0x150] sm:$0xff]
    %v239 = vld [vmem:[#allocation2 + $0x158] sm:$0xff]
    %v240 = vld [vmem:[#allocation2 + $0x160] sm:$0xff]
    %v241 = vld [vmem:[#allocation2 + $0x168] sm:$0xff]
    %v242 = vld [vmem:[#allocation2 + $0x170] sm:$0xff]
    %v243 = vld [vmem:[#allocation2 + $0x178] sm:$0xff]
    %v244 = vld [vmem:[#allocation2 + $0x180] sm:$0xff]
    %v245 = vld [vmem:[#allocation2 + $0x188] sm:$0xff]
    %v246 = vld [vmem:[#allocation2 + $0x190] sm:$0xff]
    %v247 = vld [vmem:[#allocation2 + $0x198] sm:$0xff]
    %v248 = vld [vmem:[#allocation2 + $0x1a0] sm:$0xff]
    %v249 = vld [vmem:[#allocation2 + $0x1a8] sm:$0xff]
    %v250 = vld [vmem:[#allocation2 + $0x1b0] sm:$0xff]
    %v251 = vld [vmem:[#allocation2 + $0x1b8] sm:$0xff]
    %v252 = vld [vmem:[#allocation2 + $0x1c0] sm:$0xff]
    %v253 = vld [vmem:[#allocation2 + $0x1c8] sm:$0xff]
    %v254 = vld [vmem:[#allocation2 + $0x1d0] sm:$0xff]
    %v255 = vld [vmem:[#allocation2 + $0x1d8] sm:$0xff]
    %v256 = vld [vmem:[#allocation2 + $0x1e0] sm:$0xff]
    %v257 = vld [vmem:[#allocation2 + $0x1e8] sm:$0xff]
    %v258 = vld [vmem:[#allocation2 + $0x1f0] sm:$0xff]
    %v259 = vld [vmem:[#allocation2 + $0x1f8] sm:$0xff]
    %v260 = vld [vmem:[#allocation2 + $0x200] sm:$0xff]
    %v261 = vld [vmem:[#allocation2 + $0x208] sm:$0xff]
    %v262 = vld [vmem:[#allocation2 + $0x210] sm:$0xff]
    %v263 = vld [vmem:[#allocation2 + $0x218] sm:$0xff]
    %v264 = vld [vmem:[#allocation2 + $0x220] sm:$0xff]
    %v265 = vld [vmem:[#allocation2 + $0x228] sm:$0xff]
    %v266 = vld [vmem:[#allocation2 + $0x230] sm:$0xff]
    %v267 = vld [vmem:[#allocation2 + $0x238] sm:$0xff]
    %v268 = vld [vmem:[#allocation2 + $0x240] sm:$0xff]
    %v269 = vld [vmem:[#allocation2 + $0x248] sm:$0xff]
    %v270 = vld [vmem:[#allocation2 + $0x250] sm:$0xff]
    %v271 = vld [vmem:[#allocation2 + $0x258] sm:$0xff]
    %v272 = vld [vmem:[#allocation2 + $0x260] sm:$0xff]
    %v273 = vld [vmem:[#allocation2 + $0x268] sm:$0xff]
    %v274 = vld [vmem:[#allocation2 + $0x270] sm:$0xff]
    %v275 = vld [vmem:[#allocation2 + $0x278] sm:$0xff]
    %v276 = vld [vmem:[#allocation2 + $0x280] sm:$0xff]
    %v277 = vld [vmem:[#allocation2 + $0x288] sm:$0xff]
    %v278 = vld [vmem:[#allocation2 + $0x290] sm:$0xff]
    %v279 = vld [vmem:[#allocation2 + $0x298] sm:$0xff]
    %v280 = vld [vmem:[#allocation2 + $0x2a0] sm:$0xff]
    %v281 = vld [vmem:[#allocation2 + $0x2a8] sm:$0xff]
    %v282 = vld [vmem:[#allocation2 + $0x2b0] sm:$0xff]
    %v283 = vld [vmem:[#allocation2 + $0x2b8] sm:$0xff]
    %v284 = vld [vmem:[#allocation2 + $0x2c0] sm:$0xff]
    %v285 = vld [vmem:[#allocation2 + $0x2c8] sm:$0xff]
    %v286 = vld [vmem:[#allocation2 + $0x2d0] sm:$0xff]
    %v287 = vld [vmem:[#allocation2 + $0x2d8] sm:$0xff]
    %v288 = vld [vmem:[#allocation2 + $0x2e0] sm:$0xff]
    %v289 = vld [vmem:[#allocation2 + $0x2e8] sm:$0xff]
    %v290 = vld [vmem:[#allocation2 + $0x2f0] sm:$0xff]
    %v291 = vld [vmem:[#allocation2 + $0x2f8] sm:$0xff]
    %v292 = vld [vmem:[#allocation2 + $0x300] sm:$0xff]
    %v293 = vld [vmem:[#allocation2 + $0x308] sm:$0xff]
    %v294 = vld [vmem:[#allocation2 + $0x310] sm:$0xff]
    %v295 = vld [vmem:[#allocation2 + $0x318] sm:$0xff]
    %v296 = vld [vmem:[#allocation2 + $0x320] sm:$0xff]
    %v297 = vld [vmem:[#allocation2 + $0x328] sm:$0xff]
    %v298 = vld [vmem:[#allocation2 + $0x330] sm:$0xff]
    %v299 = vld [vmem:[#allocation2 + $0x338] sm:$0xff]
    %v300 = vld [vmem:[#allocation2 + $0x340] sm:$0xff]
    %v301 = vld [vmem:[#allocation2 + $0x348] sm:$0xff]
    %v302 = vld [vmem:[#allocation2 + $0x350] sm:$0xff]
    %v303 = vld [vmem:[#allocation2 + $0x358] sm:$0xff]
    %v304 = vld [vmem:[#allocation2 + $0x360] sm:$0xff]
    %v305 = vld [vmem:[#allocation2 + $0x368] sm:$0xff]
    %v306 = vld [vmem:[#allocation2 + $0x370] sm:$0xff]
    %v307 = vld [vmem:[#allocation2 + $0x378] sm:$0xff]
    %v308 = vld [vmem:[#allocation2 + $0x380] sm:$0xff]
    %v309 = vld [vmem:[#allocation2 + $0x388] sm:$0xff]
    %v310 = vld [vmem:[#allocation2 + $0x390] sm:$0xff]
    %v311 = vld [vmem:[#allocation2 + $0x398] sm:$0xff]
    %v312 = vld [vmem:[#allocation2 + $0x3a0] sm:$0xff]
    %v313 = vld [vmem:[#allocation2 + $0x3a8] sm:$0xff]
    %v314 = vld [vmem:[#allocation2 + $0x3b0] sm:$0xff]
    %v315 = vld [vmem:[#allocation2 + $0x3b8] sm:$0xff]
    %v316 = vld [vmem:[#allocation2 + $0x3c0] sm:$0x33]
    %v317 = vld [vmem:[#allocation2 + $0x3c8] sm:$0x33]
    %v318 = vld [vmem:[#allocation2 + $0x3d0] sm:$0x33]
    %v319 = vld [vmem:[#allocation2 + $0x3d8] sm:$0x33]
    %v320 = vld [vmem:[%s3] sm:$0xff]
    %v322 = vlaneseq
    %v323 = vshrl.u32 %v322, 7
    %v324 = vsub.s32 0, %v323
    %v325 = vrot.slane %v320, %v324
    %v326 = vlaneseq
    %v327 = vshrl.u32 %v326, 7
    %v328 = vsub.s32 1, %v327
    %v329 = vrot.slane %v320, %v328
    %v330 = vlaneseq
    %v331 = vshrl.u32 %v330, 7
    %v332 = vsub.s32 2, %v331
    %v333 = vrot.slane %v320, %v332
    %v334 = vlaneseq
    %v335 = vshrl.u32 %v334, 7
    %v336 = vsub.s32 3, %v335
    %v337 = vrot.slane %v320, %v336
    %v338 = vlaneseq
    %v339 = vshrl.u32 %v338, 7
    %v340 = vsub.s32 4, %v339
    %v341 = vrot.slane %v320, %v340
    %v342 = vlaneseq
    %v343 = vshrl.u32 %v342, 7
    %v344 = vsub.s32 5, %v343
    %v345 = vrot.slane %v320, %v344
    %v346 = vlaneseq
    %v347 = vshrl.u32 %v346, 7
    %v348 = vsub.s32 6, %v347
    %v349 = vrot.slane %v320, %v348
    %v350 = vlaneseq
    %v351 = vshrl.u32 %v350, 7
    %v352 = vsub.s32 7, %v351
    %v353 = vrot.slane %v320, %v352
    %v486 = vunpack.c.l.b16 %v196
    %v487 = vunpack.c.h.b16 %v196
    %v488 = vunpack.c.l.b16 %v197
    %v489 = vunpack.c.h.b16 %v197
    %v490 = vunpack.c.l.b16 %v198
    %v491 = vunpack.c.h.b16 %v198
    %v492 = vunpack.c.l.b16 %v199
    %v493 = vunpack.c.h.b16 %v199
    %v494 = vunpack.c.l.b16 %v200
    %v495 = vunpack.c.h.b16 %v200
    %v496 = vunpack.c.l.b16 %v201
    %v497 = vunpack.c.h.b16 %v201
    %v498 = vunpack.c.l.b16 %v202
    %v499 = vunpack.c.h.b16 %v202
    %v500 = vunpack.c.l.b16 %v203
    %v501 = vunpack.c.h.b16 %v203
    %v502 = vunpack.c.l.b16 %v204
    %v503 = vunpack.c.h.b16 %v204
    %v504 = vunpack.c.l.b16 %v205
    %v505 = vunpack.c.h.b16 %v205
    %v506 = vunpack.c.l.b16 %v206
    %v507 = vunpack.c.h.b16 %v206
    %v508 = vunpack.c.l.b16 %v207
    %v509 = vunpack.c.h.b16 %v207
    %v510 = vunpack.c.l.b16 %v208
    %v511 = vunpack.c.h.b16 %v208
    %v512 = vunpack.c.l.b16 %v209
    %v513 = vunpack.c.h.b16 %v209
    %v514 = vunpack.c.l.b16 %v210
    %v515 = vunpack.c.h.b16 %v210
    %v516 = vunpack.c.l.b16 %v211
    %v517 = vunpack.c.h.b16 %v211
    %v518 = vunpack.c.l.b16 %v212
    %v519 = vunpack.c.h.b16 %v212
    %v520 = vunpack.c.l.b16 %v213
    %v521 = vunpack.c.h.b16 %v213
    %v522 = vunpack.c.l.b16 %v214
    %v523 = vunpack.c.h.b16 %v214
    %v524 = vunpack.c.l.b16 %v215
    %v525 = vunpack.c.h.b16 %v215
    %v526 = vunpack.c.l.b16 %v216
    %v527 = vunpack.c.h.b16 %v216
    %v528 = vunpack.c.l.b16 %v217
    %v529 = vunpack.c.h.b16 %v217
    %v530 = vunpack.c.l.b16 %v218
    %v531 = vunpack.c.h.b16 %v218
    %v532 = vunpack.c.l.b16 %v219
    %v533 = vunpack.c.h.b16 %v219
    %v534 = vunpack.c.l.b16 %v220
    %v535 = vunpack.c.h.b16 %v220
    %v536 = vunpack.c.l.b16 %v221
    %v537 = vunpack.c.h.b16 %v221
    %v538 = vunpack.c.l.b16 %v222
    %v539 = vunpack.c.h.b16 %v222
    %v540 = vunpack.c.l.b16 %v223
    %v541 = vunpack.c.h.b16 %v223
    %v542 = vunpack.c.l.b16 %v224
    %v543 = vunpack.c.h.b16 %v224
    %v544 = vunpack.c.l.b16 %v225
    %v545 = vunpack.c.h.b16 %v225
    %v546 = vunpack.c.l.b16 %v226
    %v547 = vunpack.c.h.b16 %v226
    %v548 = vunpack.c.l.b16 %v227
    %v549 = vunpack.c.h.b16 %v227
    %v550 = vunpack.c.l.b16 %v228
    %v551 = vunpack.c.h.b16 %v228
    %v552 = vunpack.c.l.b16 %v229
    %v553 = vunpack.c.h.b16 %v229
    %v554 = vunpack.c.l.b16 %v230
    %v555 = vunpack.c.h.b16 %v230
    %v556 = vunpack.c.l.b16 %v231
    %v557 = vunpack.c.h.b16 %v231
    %v558 = vunpack.c.l.b16 %v232
    %v559 = vunpack.c.h.b16 %v232
    %v560 = vunpack.c.l.b16 %v233
    %v561 = vunpack.c.h.b16 %v233
    %v562 = vunpack.c.l.b16 %v234
    %v563 = vunpack.c.h.b16 %v234
    %v564 = vunpack.c.l.b16 %v235
    %v565 = vunpack.c.h.b16 %v235
    %v566 = vunpack.c.l.b16 %v236
    %v567 = vunpack.c.h.b16 %v236
    %v568 = vunpack.c.l.b16 %v237
    %v569 = vunpack.c.h.b16 %v237
    %v570 = vunpack.c.l.b16 %v238
    %v571 = vunpack.c.h.b16 %v238
    %v572 = vunpack.c.l.b16 %v239
    %v573 = vunpack.c.h.b16 %v239
    %v574 = vunpack.c.l.b16 %v240
    %v575 = vunpack.c.h.b16 %v240
    %v576 = vunpack.c.l.b16 %v241
    %v577 = vunpack.c.h.b16 %v241
    %v578 = vunpack.c.l.b16 %v242
    %v579 = vunpack.c.h.b16 %v242
    %v580 = vunpack.c.l.b16 %v243
    %v581 = vunpack.c.h.b16 %v243
    %v582 = vunpack.c.l.b16 %v244
    %v583 = vunpack.c.h.b16 %v244
    %v584 = vunpack.c.l.b16 %v245
    %v585 = vunpack.c.h.b16 %v245
    %v586 = vunpack.c.l.b16 %v246
    %v587 = vunpack.c.h.b16 %v246
    %v588 = vunpack.c.l.b16 %v247
    %v589 = vunpack.c.h.b16 %v247
    %v590 = vunpack.c.l.b16 %v248
    %v591 = vunpack.c.h.b16 %v248
    %v592 = vunpack.c.l.b16 %v249
    %v593 = vunpack.c.h.b16 %v249
    %v594 = vunpack.c.l.b16 %v250
    %v595 = vunpack.c.h.b16 %v250
    %v596 = vunpack.c.l.b16 %v251
    %v597 = vunpack.c.h.b16 %v251
    %v598 = vunpack.c.l.b16 %v252
    %v599 = vunpack.c.h.b16 %v252
    %v600 = vunpack.c.l.b16 %v253
    %v601 = vunpack.c.h.b16 %v253
    %v602 = vunpack.c.l.b16 %v254
    %v603 = vunpack.c.h.b16 %v254
    %v604 = vunpack.c.l.b16 %v255
    %v605 = vunpack.c.h.b16 %v255
    %v606 = vunpack.c.l.b16 %v256
    %v607 = vunpack.c.h.b16 %v256
    %v608 = vunpack.c.l.b16 %v257
    %v609 = vunpack.c.h.b16 %v257
    %v610 = vunpack.c.l.b16 %v258
    %v611 = vunpack.c.h.b16 %v258
    %v612 = vunpack.c.l.b16 %v259
    %v613 = vunpack.c.h.b16 %v259
    %v614 = vunpack.c.l.b16 %v260
    %v615 = vunpack.c.h.b16 %v260
    %v616 = vunpack.c.l.b16 %v261
    %v617 = vunpack.c.h.b16 %v261
    %v618 = vunpack.c.l.b16 %v262
    %v619 = vunpack.c.h.b16 %v262
    %v620 = vunpack.c.l.b16 %v263
    %v621 = vunpack.c.h.b16 %v263
    %v622 = vunpack.c.l.b16 %v264
    %v623 = vunpack.c.h.b16 %v264
    %v624 = vunpack.c.l.b16 %v265
    %v625 = vunpack.c.h.b16 %v265
    %v626 = vunpack.c.l.b16 %v266
    %v627 = vunpack.c.h.b16 %v266
    %v628 = vunpack.c.l.b16 %v267
    %v629 = vunpack.c.h.b16 %v267
    %v630 = vunpack.c.l.b16 %v268
    %v631 = vunpack.c.h.b16 %v268
    %v632 = vunpack.c.l.b16 %v269
    %v633 = vunpack.c.h.b16 %v269
    %v634 = vunpack.c.l.b16 %v270
    %v635 = vunpack.c.h.b16 %v270
    %v636 = vunpack.c.l.b16 %v271
    %v637 = vunpack.c.h.b16 %v271
    %v638 = vunpack.c.l.b16 %v272
    %v639 = vunpack.c.h.b16 %v272
    %v640 = vunpack.c.l.b16 %v273
    %v641 = vunpack.c.h.b16 %v273
    %v642 = vunpack.c.l.b16 %v274
    %v643 = vunpack.c.h.b16 %v274
    %v644 = vunpack.c.l.b16 %v275
    %v645 = vunpack.c.h.b16 %v275
    %v646 = vunpack.c.l.b16 %v276
    %v647 = vunpack.c.h.b16 %v276
    %v648 = vunpack.c.l.b16 %v277
    %v649 = vunpack.c.h.b16 %v277
    %v650 = vunpack.c.l.b16 %v278
    %v651 = vunpack.c.h.b16 %v278
    %v652 = vunpack.c.l.b16 %v279
    %v653 = vunpack.c.h.b16 %v279
    %v654 = vunpack.c.l.b16 %v280
    %v655 = vunpack.c.h.b16 %v280
    %v656 = vunpack.c.l.b16 %v281
    %v657 = vunpack.c.h.b16 %v281
    %v658 = vunpack.c.l.b16 %v282
    %v659 = vunpack.c.h.b16 %v282
    %v660 = vunpack.c.l.b16 %v283
    %v661 = vunpack.c.h.b16 %v283
    %v662 = vunpack.c.l.b16 %v284
    %v663 = vunpack.c.h.b16 %v284
    %v664 = vunpack.c.l.b16 %v285
    %v665 = vunpack.c.h.b16 %v285
    %v666 = vunpack.c.l.b16 %v286
    %v667 = vunpack.c.h.b16 %v286
    %v668 = vunpack.c.l.b16 %v287
    %v669 = vunpack.c.h.b16 %v287
    %v670 = vunpack.c.l.b16 %v288
    %v671 = vunpack.c.h.b16 %v288
    %v672 = vunpack.c.l.b16 %v289
    %v673 = vunpack.c.h.b16 %v289
    %v674 = vunpack.c.l.b16 %v290
    %v675 = vunpack.c.h.b16 %v290
    %v676 = vunpack.c.l.b16 %v291
    %v677 = vunpack.c.h.b16 %v291
    %v678 = vunpack.c.l.b16 %v292
    %v679 = vunpack.c.h.b16 %v292
    %v680 = vunpack.c.l.b16 %v293
    %v681 = vunpack.c.h.b16 %v293
    %v682 = vunpack.c.l.b16 %v294
    %v683 = vunpack.c.h.b16 %v294
    %v684 = vunpack.c.l.b16 %v295
    %v685 = vunpack.c.h.b16 %v295
    %v686 = vunpack.c.l.b16 %v296
    %v687 = vunpack.c.h.b16 %v296
    %v688 = vunpack.c.l.b16 %v297
    %v689 = vunpack.c.h.b16 %v297
    %v690 = vunpack.c.l.b16 %v298
    %v691 = vunpack.c.h.b16 %v298
    %v692 = vunpack.c.l.b16 %v299
    %v693 = vunpack.c.h.b16 %v299
    %v694 = vunpack.c.l.b16 %v300
    %v695 = vunpack.c.h.b16 %v300
    %v696 = vunpack.c.l.b16 %v301
    %v697 = vunpack.c.h.b16 %v301
    %v698 = vunpack.c.l.b16 %v302
    %v699 = vunpack.c.h.b16 %v302
    %v700 = vunpack.c.l.b16 %v303
    %v701 = vunpack.c.h.b16 %v303
    %v702 = vunpack.c.l.b16 %v304
    %v703 = vunpack.c.h.b16 %v304
    %v704 = vunpack.c.l.b16 %v305
    %v705 = vunpack.c.h.b16 %v305
    %v706 = vunpack.c.l.b16 %v306
    %v707 = vunpack.c.h.b16 %v306
    %v708 = vunpack.c.l.b16 %v307
    %v709 = vunpack.c.h.b16 %v307
    %v710 = vunpack.c.l.b16 %v308
    %v711 = vunpack.c.h.b16 %v308
    %v712 = vunpack.c.l.b16 %v309
    %v713 = vunpack.c.h.b16 %v309
    %v714 = vunpack.c.l.b16 %v310
    %v715 = vunpack.c.h.b16 %v310
    %v716 = vunpack.c.l.b16 %v311
    %v717 = vunpack.c.h.b16 %v311
    %v718 = vunpack.c.l.b16 %v312
    %v719 = vunpack.c.h.b16 %v312
    %v720 = vunpack.c.l.b16 %v313
    %v721 = vunpack.c.h.b16 %v313
    %v722 = vunpack.c.l.b16 %v314
    %v723 = vunpack.c.h.b16 %v314
    %v724 = vunpack.c.l.b16 %v315
    %v725 = vunpack.c.h.b16 %v315
    %v726 = vunpack.c.l.b16 %v316
    %v727 = vunpack.c.h.b16 %v316
    %v728 = vunpack.c.l.b16 %v317
    %v729 = vunpack.c.h.b16 %v317
    %v730 = vunpack.c.l.b16 %v318
    %v731 = vunpack.c.h.b16 %v318
    %v732 = vunpack.c.l.b16 %v319
    %v733 = vunpack.c.h.b16 %v319
    %v734 = vpack.c.b16 %v494, %v486
    %v735 = vpack.c.b16 %v495, %v487
    %v736 = vpack.c.b16 %v496, %v488
    %v737 = vpack.c.b16 %v497, %v489
    %v738 = vpack.c.b16 %v498, %v490
    %v739 = vpack.c.b16 %v499, %v491
    %v740 = vpack.c.b16 %v500, %v492
    %v741 = vpack.c.b16 %v501, %v493
    %v742 = vpack.c.b16 %v510, %v502
    %v743 = vpack.c.b16 %v511, %v503
    %v744 = vpack.c.b16 %v512, %v504
    %v745 = vpack.c.b16 %v513, %v505
    %v746 = vpack.c.b16 %v514, %v506
    %v747 = vpack.c.b16 %v515, %v507
    %v748 = vpack.c.b16 %v516, %v508
    %v749 = vpack.c.b16 %v517, %v509
    %v750 = vpack.c.b16 %v526, %v518
    %v751 = vpack.c.b16 %v527, %v519
    %v752 = vpack.c.b16 %v528, %v520
    %v753 = vpack.c.b16 %v529, %v521
    %v754 = vpack.c.b16 %v530, %v522
    %v755 = vpack.c.b16 %v531, %v523
    %v756 = vpack.c.b16 %v532, %v524
    %v757 = vpack.c.b16 %v533, %v525
    %v758 = vpack.c.b16 %v542, %v534
    %v759 = vpack.c.b16 %v543, %v535
    %v760 = vpack.c.b16 %v544, %v536
    %v761 = vpack.c.b16 %v545, %v537
    %v762 = vpack.c.b16 %v546, %v538
    %v763 = vpack.c.b16 %v547, %v539
    %v764 = vpack.c.b16 %v548, %v540
    %v765 = vpack.c.b16 %v549, %v541
    %v766 = vpack.c.b16 %v558, %v550
    %v767 = vpack.c.b16 %v559, %v551
    %v768 = vpack.c.b16 %v560, %v552
    %v769 = vpack.c.b16 %v561, %v553
    %v770 = vpack.c.b16 %v562, %v554
    %v771 = vpack.c.b16 %v563, %v555
    %v772 = vpack.c.b16 %v564, %v556
    %v773 = vpack.c.b16 %v565, %v557
    %v774 = vpack.c.b16 %v574, %v566
    %v775 = vpack.c.b16 %v575, %v567
    %v776 = vpack.c.b16 %v576, %v568
    %v777 = vpack.c.b16 %v577, %v569
    %v778 = vpack.c.b16 %v578, %v570
    %v779 = vpack.c.b16 %v579, %v571
    %v780 = vpack.c.b16 %v580, %v572
    %v781 = vpack.c.b16 %v581, %v573
    %v782 = vpack.c.b16 %v590, %v582
    %v783 = vpack.c.b16 %v591, %v583
    %v784 = vpack.c.b16 %v592, %v584
    %v785 = vpack.c.b16 %v593, %v585
    %v786 = vpack.c.b16 %v594, %v586
    %v787 = vpack.c.b16 %v595, %v587
    %v788 = vpack.c.b16 %v596, %v588
    %v789 = vpack.c.b16 %v597, %v589
    %v790 = vpack.c.b16 %v606, %v598
    %v791 = vpack.c.b16 %v607, %v599
    %v792 = vpack.c.b16 %v608, %v600
    %v793 = vpack.c.b16 %v609, %v601
    %v794 = vpack.c.b16 %v610, %v602
    %v795 = vpack.c.b16 %v611, %v603
    %v796 = vpack.c.b16 %v612, %v604
    %v797 = vpack.c.b16 %v613, %v605
    %v798 = vpack.c.b16 %v622, %v614
    %v799 = vpack.c.b16 %v623, %v615
    %v800 = vpack.c.b16 %v624, %v616
    %v801 = vpack.c.b16 %v625, %v617
    %v802 = vpack.c.b16 %v626, %v618
    %v803 = vpack.c.b16 %v627, %v619
    %v804 = vpack.c.b16 %v628, %v620
    %v805 = vpack.c.b16 %v629, %v621
    %v806 = vpack.c.b16 %v638, %v630
    %v807 = vpack.c.b16 %v639, %v631
    %v808 = vpack.c.b16 %v640, %v632
    %v809 = vpack.c.b16 %v641, %v633
    %v810 = vpack.c.b16 %v642, %v634
    %v811 = vpack.c.b16 %v643, %v635
    %v812 = vpack.c.b16 %v644, %v636
    %v813 = vpack.c.b16 %v645, %v637
    %v814 = vpack.c.b16 %v654, %v646
    %v815 = vpack.c.b16 %v655, %v647
    %v816 = vpack.c.b16 %v656, %v648
    %v817 = vpack.c.b16 %v657, %v649
    %v818 = vpack.c.b16 %v658, %v650
    %v819 = vpack.c.b16 %v659, %v651
    %v820 = vpack.c.b16 %v660, %v652
    %v821 = vpack.c.b16 %v661, %v653
    %v822 = vpack.c.b16 %v670, %v662
    %v823 = vpack.c.b16 %v671, %v663
    %v824 = vpack.c.b16 %v672, %v664
    %v825 = vpack.c.b16 %v673, %v665
    %v826 = vpack.c.b16 %v674, %v666
    %v827 = vpack.c.b16 %v675, %v667
    %v828 = vpack.c.b16 %v676, %v668
    %v829 = vpack.c.b16 %v677, %v669
    %v830 = vpack.c.b16 %v686, %v678
    %v831 = vpack.c.b16 %v687, %v679
    %v832 = vpack.c.b16 %v688, %v680
    %v833 = vpack.c.b16 %v689, %v681
    %v834 = vpack.c.b16 %v690, %v682
    %v835 = vpack.c.b16 %v691, %v683
    %v836 = vpack.c.b16 %v692, %v684
    %v837 = vpack.c.b16 %v693, %v685
    %v838 = vpack.c.b16 %v702, %v694
    %v839 = vpack.c.b16 %v703, %v695
    %v840 = vpack.c.b16 %v704, %v696
    %v841 = vpack.c.b16 %v705, %v697
    %v842 = vpack.c.b16 %v706, %v698
    %v843 = vpack.c.b16 %v707, %v699
    %v844 = vpack.c.b16 %v708, %v700
    %v845 = vpack.c.b16 %v709, %v701
    %v846 = vpack.c.b16 %v718, %v710
    %v847 = vpack.c.b16 %v719, %v711
    %v848 = vpack.c.b16 %v720, %v712
    %v849 = vpack.c.b16 %v721, %v713
    %v850 = vpack.c.b16 %v722, %v714
    %v851 = vpack.c.b16 %v723, %v715
    %v852 = vpack.c.b16 %v724, %v716
    %v853 = vpack.c.b16 %v725, %v717
    %v854 = vpack.c.b16 %v726, %v726
    %v855 = vpack.c.b16 %v727, %v727
    %v856 = vpack.c.b16 %v728, %v728
    %v857 = vpack.c.b16 %v729, %v729
    %v858 = vpack.c.b16 %v730, %v730
    %v859 = vpack.c.b16 %v731, %v731
    %v860 = vpack.c.b16 %v732, %v732
    %v861 = vpack.c.b16 %v733, %v733
    %vm982 = vcmask 949248
    %v984 = vsel %vm982, %v71, 0
    %vm986 = vcmask 1041408
    %v988 = vsel %vm986, %v854, 0
    %v991 = vsel %vm986, %v855, 0
    %v994 = vsel %vm986, %v856, 0
    %v997 = vsel %vm986, %v857, 0
    %v1000 = vsel %vm986, %v858, 0
    %v1003 = vsel %vm986, %v859, 0
    %v1006 = vsel %vm986, %v860, 0
    %v1009 = vsel %vm986, %v861, 0
    %1011 = vmatprep.subr.bf16.mxu0 %v735
    %1012 = vmatpush1.bf16.msra.mxu0 %v734
    %1013 = vmatprep.subr.bf16.mxu0 %v743
    %1014 = vmatpush1.bf16.msra.mxu0 %v742
    %1015 = vmatprep.subr.bf16.mxu0 %v751
    %1016 = vmatpush1.bf16.msra.mxu0 %v750
    %1017 = vmatprep.subr.bf16.mxu0 %v759
    %1018 = vmatpush1.bf16.msra.mxu0 %v758
    %1019 = vmatprep.subr.bf16.mxu0 %v767
    %1020 = vmatpush1.bf16.msra.mxu0 %v766
    %1021 = vmatprep.subr.bf16.mxu0 %v775
    %1022 = vmatpush1.bf16.msra.mxu0 %v774
    %1023 = vmatprep.subr.bf16.mxu0 %v783
    %1024 = vmatpush1.bf16.msra.mxu0 %v782
    %1025 = vmatprep.subr.bf16.mxu0 %v791
    %1026 = vmatpush1.bf16.msra.mxu0 %v790
    %1027 = vmatprep.subr.bf16.mxu0 %v799
    %1028 = vmatpush1.bf16.msra.mxu0 %v798
    %1029 = vmatprep.subr.bf16.mxu0 %v807
    %1030 = vmatpush1.bf16.msra.mxu0 %v806
    %1031 = vmatprep.subr.bf16.mxu0 %v815
    %1032 = vmatpush1.bf16.msra.mxu0 %v814
    %1033 = vmatprep.subr.bf16.mxu0 %v823
    %1034 = vmatpush1.bf16.msra.mxu0 %v822
    %1035 = vmatprep.subr.bf16.mxu0 %v831
    %1036 = vmatpush1.bf16.msra.mxu0 %v830
    %1037 = vmatprep.subr.bf16.mxu0 %v839
    %1038 = vmatpush1.bf16.msra.mxu0 %v838
    %1039 = vmatprep.subr.bf16.mxu0 %v847
    %1040 = vmatpush1.bf16.msra.mxu0 %v846
    %1041 = vmatprep.subr.bf16.mxu0 %v991
    %1042 = vmatpush1.bf16.msra.mxu0 %v988
    %1043 = vmatprep.mubr.bf16.mxu0 %v984
    %1044 = vmatmul.mubr.bf16.gmra.mrb[0].mxu0 %v70
    %v1045 = vpop.f32.mrb[0].mxu0
    %v1046 = vadd.f32 %v325, %v1045
    %v1047 = vpop.f32.mrb[0].mxu0
    %v1048 = vadd.f32 %v329, %v1047
    %v1049 = vpop.f32.mrb[0].mxu0
    %v1050 = vpop.f32.mrb[0].mxu0
    %1051 = vdwg.mxu0
    %1052 = vmatprep.subr.bf16.mxu0 %v737
    %1053 = vmatpush1.bf16.msra.mxu0 %v736
    %1054 = vmatprep.subr.bf16.mxu0 %v745
    %1055 = vmatpush1.bf16.msra.mxu0 %v744
    %1056 = vmatprep.subr.bf16.mxu0 %v753
    %1057 = vmatpush1.bf16.msra.mxu0 %v752
    %1058 = vmatprep.subr.bf16.mxu0 %v761
    %1059 = vmatpush1.bf16.msra.mxu0 %v760
    %1060 = vmatprep.subr.bf16.mxu0 %v769
    %1061 = vmatpush1.bf16.msra.mxu0 %v768
    %1062 = vmatprep.subr.bf16.mxu0 %v777
    %1063 = vmatpush1.bf16.msra.mxu0 %v776
    %1064 = vmatprep.subr.bf16.mxu0 %v785
    %1065 = vmatpush1.bf16.msra.mxu0 %v784
    %1066 = vmatprep.subr.bf16.mxu0 %v793
    %1067 = vmatpush1.bf16.msra.mxu0 %v792
    %1068 = vmatprep.subr.bf16.mxu0 %v801
    %1069 = vmatpush1.bf16.msra.mxu0 %v800
    %1070 = vmatprep.subr.bf16.mxu0 %v809
    %1071 = vmatpush1.bf16.msra.mxu0 %v808
    %1072 = vmatprep.subr.bf16.mxu0 %v817
    %1073 = vmatpush1.bf16.msra.mxu0 %v816
    %1074 = vmatprep.subr.bf16.mxu0 %v825
    %1075 = vmatpush1.bf16.msra.mxu0 %v824
    %1076 = vmatprep.subr.bf16.mxu0 %v833
    %1077 = vmatpush1.bf16.msra.mxu0 %v832
    %1078 = vmatprep.subr.bf16.mxu0 %v841
    %1079 = vmatpush1.bf16.msra.mxu0 %v840
    %1080 = vmatprep.subr.bf16.mxu0 %v849
    %1081 = vmatpush1.bf16.msra.mxu0 %v848
    %1082 = vmatprep.subr.bf16.mxu0 %v997
    %1083 = vmatpush1.bf16.msra.mxu0 %v994
    %1084 = vmatprep.mubr.bf16.mxu0 %v984
    %1085 = vmatmul.mubr.bf16.gmra.mrb[0].mxu0 %v70
    %v1086 = vpop.f32.mrb[0].mxu0
    %v1087 = vadd.f32 %v333, %v1086
    %v1088 = vpop.f32.mrb[0].mxu0
    %v1089 = vadd.f32 %v337, %v1088
    %v1090 = vpop.f32.mrb[0].mxu0
    %v1091 = vpop.f32.mrb[0].mxu0
    %1092 = vdwg.mxu0
    %1093 = vmatprep.subr.bf16.mxu0 %v739
    %1094 = vmatpush1.bf16.msra.mxu0 %v738
    %1095 = vmatprep.subr.bf16.mxu0 %v747
    %1096 = vmatpush1.bf16.msra.mxu0 %v746
    %1097 = vmatprep.subr.bf16.mxu0 %v755
    %1098 = vmatpush1.bf16.msra.mxu0 %v754
    %1099 = vmatprep.subr.bf16.mxu0 %v763
    %1100 = vmatpush1.bf16.msra.mxu0 %v762
    %1101 = vmatprep.subr.bf16.mxu0 %v771
    %1102 = vmatpush1.bf16.msra.mxu0 %v770
    %1103 = vmatprep.subr.bf16.mxu0 %v779
    %1104 = vmatpush1.bf16.msra.mxu0 %v778
    %1105 = vmatprep.subr.bf16.mxu0 %v787
    %1106 = vmatpush1.bf16.msra.mxu0 %v786
    %1107 = vmatprep.subr.bf16.mxu0 %v795
    %1108 = vmatpush1.bf16.msra.mxu0 %v794
    %1109 = vmatprep.subr.bf16.mxu0 %v803
    %1110 = vmatpush1.bf16.msra.mxu0 %v802
    %1111 = vmatprep.subr.bf16.mxu0 %v811
    %1112 = vmatpush1.bf16.msra.mxu0 %v810
    %1113 = vmatprep.subr.bf16.mxu0 %v819
    %1114 = vmatpush1.bf16.msra.mxu0 %v818
    %1115 = vmatprep.subr.bf16.mxu0 %v827
    %1116 = vmatpush1.bf16.msra.mxu0 %v826
    %1117 = vmatprep.subr.bf16.mxu0 %v835
    %1118 = vmatpush1.bf16.msra.mxu0 %v834
    %1119 = vmatprep.subr.bf16.mxu0 %v843
    %1120 = vmatpush1.bf16.msra.mxu0 %v842
    %1121 = vmatprep.subr.bf16.mxu0 %v851
    %1122 = vmatpush1.bf16.msra.mxu0 %v850
    %1123 = vmatprep.subr.bf16.mxu0 %v1003
    %1124 = vmatpush1.bf16.msra.mxu0 %v1000
    %1125 = vmatprep.mubr.bf16.mxu0 %v984
    %1126 = vmatmul.mubr.bf16.gmra.mrb[0].mxu0 %v70
    %v1127 = vpop.f32.mrb[0].mxu0
    %v1128 = vadd.f32 %v341, %v1127
    %v1129 = vpop.f32.mrb[0].mxu0
    %v1130 = vadd.f32 %v345, %v1129
    %v1131 = vpop.f32.mrb[0].mxu0
    %v1132 = vpop.f32.mrb[0].mxu0
    %1133 = vdwg.mxu0
    %1134 = vmatprep.subr.bf16.mxu0 %v741
    %1135 = vmatpush1.bf16.msra.mxu0 %v740
    %1136 = vmatprep.subr.bf16.mxu0 %v749
    %1137 = vmatpush1.bf16.msra.mxu0 %v748
    %1138 = vmatprep.subr.bf16.mxu0 %v757
    %1139 = vmatpush1.bf16.msra.mxu0 %v756
    %1140 = vmatprep.subr.bf16.mxu0 %v765
    %1141 = vmatpush1.bf16.msra.mxu0 %v764
    %1142 = vmatprep.subr.bf16.mxu0 %v773
    %1143 = vmatpush1.bf16.msra.mxu0 %v772
    %1144 = vmatprep.subr.bf16.mxu0 %v781
    %1145 = vmatpush1.bf16.msra.mxu0 %v780
    %1146 = vmatprep.subr.bf16.mxu0 %v789
    %1147 = vmatpush1.bf16.msra.mxu0 %v788
    %1148 = vmatprep.subr.bf16.mxu0 %v797
    %1149 = vmatpush1.bf16.msra.mxu0 %v796
    %1150 = vmatprep.subr.bf16.mxu0 %v805
    %1151 = vmatpush1.bf16.msra.mxu0 %v804
    %1152 = vmatprep.subr.bf16.mxu0 %v813
    %1153 = vmatpush1.bf16.msra.mxu0 %v812
    %1154 = vmatprep.subr.bf16.mxu0 %v821
    %1155 = vmatpush1.bf16.msra.mxu0 %v820
    %1156 = vmatprep.subr.bf16.mxu0 %v829
    %1157 = vmatpush1.bf16.msra.mxu0 %v828
    %1158 = vmatprep.subr.bf16.mxu0 %v837
    %1159 = vmatpush1.bf16.msra.mxu0 %v836
    %1160 = vmatprep.subr.bf16.mxu0 %v845
    %1161 = vmatpush1.bf16.msra.mxu0 %v844
    %1162 = vmatprep.subr.bf16.mxu0 %v853
    %1163 = vmatpush1.bf16.msra.mxu0 %v852
    %1164 = vmatprep.subr.bf16.mxu0 %v1009
    %1165 = vmatpush1.bf16.msra.mxu0 %v1006
    %1166 = vmatprep.mubr.bf16.mxu0 %v984
    %1167 = vmatmul.mubr.bf16.gmra.mrb[0].mxu0 %v70
    %v1168 = vpop.f32.mrb[0].mxu0
    %v1169 = vadd.f32 %v349, %v1168
    %v1170 = vpop.f32.mrb[0].mxu0
    %v1171 = vadd.f32 %v353, %v1170
    %v1172 = vpop.f32.mrb[0].mxu0
    %v1173 = vpop.f32.mrb[0].mxu0
    %1174 = vdwg.mxu0
    %v1175 = vmax.f32 %v1046, 0.0
    %v1176 = vmax.f32 %v1048, 0.0
    %v1177 = vmax.f32 %v1087, 0.0
    %v1178 = vmax.f32 %v1089, 0.0
    %v1179 = vmax.f32 %v1128, 0.0
    %v1180 = vmax.f32 %v1130, 0.0
    %v1181 = vmax.f32 %v1169, 0.0
    %v1182 = vmax.f32 %v1171, 0.0
    %v1183 = vpack.c.bf16 %v1175, %v1175
    %v1184 = vpack.c.bf16 %v1176, %v1176
    %v1185 = vpack.c.bf16 %v1177, %v1177
    %v1186 = vpack.c.bf16 %v1178, %v1178
    %v1187 = vpack.c.bf16 %v1179, %v1179
    %v1188 = vpack.c.bf16 %v1180, %v1180
    %v1189 = vpack.c.bf16 %v1181, %v1181
    %v1190 = vpack.c.bf16 %v1182, %v1182
    %v1191 = vld [vmem:[#allocation5] sm:$0xff]
    %v1192 = vld [vmem:[#allocation5 + $0x8] sm:$0xff]
    %v1193 = vld [vmem:[#allocation5 + $0x10] sm:$0xff]
    %v1194 = vld [vmem:[#allocation5 + $0x18] sm:$0xff]
    %v1195 = vld [vmem:[#allocation5 + $0x20] sm:$0xff]
    %v1196 = vld [vmem:[#allocation5 + $0x28] sm:$0xff]
    %v1197 = vld [vmem:[#allocation5 + $0x30] sm:$0xff]
    %v1198 = vld [vmem:[#allocation5 + $0x38] sm:$0xff]
    %v1199 = vld [vmem:[#allocation5 + $0x40] sm:$0xff]
    %v1200 = vld [vmem:[#allocation5 + $0x48] sm:$0xff]
    %v1201 = vld [vmem:[#allocation5 + $0x50] sm:$0xff]
    %v1202 = vld [vmem:[#allocation5 + $0x58] sm:$0xff]
    %v1203 = vld [vmem:[#allocation5 + $0x60] sm:$0xff]
    %v1204 = vld [vmem:[#allocation5 + $0x68] sm:$0xff]
    %v1205 = vld [vmem:[#allocation5 + $0x70] sm:$0xff]
    %v1206 = vld [vmem:[#allocation5 + $0x78] sm:$0xff]
    %v1207 = vld [vmem:[#allocation5 + $0x80] sm:$0xff]
    %v1208 = vld [vmem:[#allocation5 + $0x88] sm:$0xff]
    %v1209 = vld [vmem:[#allocation5 + $0x90] sm:$0xff]
    %v1210 = vld [vmem:[#allocation5 + $0x98] sm:$0xff]
    %v1211 = vld [vmem:[#allocation5 + $0xa0] sm:$0xff]
    %v1212 = vld [vmem:[#allocation5 + $0xa8] sm:$0xff]
    %v1213 = vld [vmem:[#allocation5 + $0xb0] sm:$0xff]
    %v1214 = vld [vmem:[#allocation5 + $0xb8] sm:$0xff]
    %v1215 = vld [vmem:[#allocation5 + $0xc0] sm:$0xff]
    %v1216 = vld [vmem:[#allocation5 + $0xc8] sm:$0xff]
    %v1217 = vld [vmem:[#allocation5 + $0xd0] sm:$0xff]
    %v1218 = vld [vmem:[#allocation5 + $0xd8] sm:$0xff]
    %v1219 = vld [vmem:[#allocation5 + $0xe0] sm:$0xff]
    %v1220 = vld [vmem:[#allocation5 + $0xe8] sm:$0xff]
    %v1221 = vld [vmem:[#allocation5 + $0xf0] sm:$0xff]
    %v1222 = vld [vmem:[#allocation5 + $0xf8] sm:$0xff]
    %v1223 = vld [vmem:[#allocation5 + $0x100] sm:$0xff]
    %v1224 = vld [vmem:[#allocation5 + $0x108] sm:$0xff]
    %v1225 = vld [vmem:[#allocation5 + $0x110] sm:$0xff]
    %v1226 = vld [vmem:[#allocation5 + $0x118] sm:$0xff]
    %v1227 = vld [vmem:[#allocation5 + $0x120] sm:$0xff]
    %v1228 = vld [vmem:[#allocation5 + $0x128] sm:$0xff]
    %v1229 = vld [vmem:[#allocation5 + $0x130] sm:$0xff]
    %v1230 = vld [vmem:[#allocation5 + $0x138] sm:$0xff]
    %v1231 = vld [vmem:[#allocation5 + $0x140] sm:$0xff]
    %v1232 = vld [vmem:[#allocation5 + $0x148] sm:$0xff]
    %v1233 = vld [vmem:[#allocation5 + $0x150] sm:$0xff]
    %v1234 = vld [vmem:[#allocation5 + $0x158] sm:$0xff]
    %v1235 = vld [vmem:[#allocation5 + $0x160] sm:$0xff]
    %v1236 = vld [vmem:[#allocation5 + $0x168] sm:$0xff]
    %v1237 = vld [vmem:[#allocation5 + $0x170] sm:$0xff]
    %v1238 = vld [vmem:[#allocation5 + $0x178] sm:$0xff]
    %v1239 = vld [vmem:[#allocation5 + $0x180] sm:$0xff]
    %v1240 = vld [vmem:[#allocation5 + $0x188] sm:$0xff]
    %v1241 = vld [vmem:[#allocation5 + $0x190] sm:$0xff]
    %v1242 = vld [vmem:[#allocation5 + $0x198] sm:$0xff]
    %v1243 = vld [vmem:[#allocation5 + $0x1a0] sm:$0xff]
    %v1244 = vld [vmem:[#allocation5 + $0x1a8] sm:$0xff]
    %v1245 = vld [vmem:[#allocation5 + $0x1b0] sm:$0xff]
    %v1246 = vld [vmem:[#allocation5 + $0x1b8] sm:$0xff]
    %v1247 = vld [vmem:[#allocation5 + $0x1c0] sm:$0xff]
    %v1248 = vld [vmem:[#allocation5 + $0x1c8] sm:$0xff]
    %v1249 = vld [vmem:[#allocation5 + $0x1d0] sm:$0xff]
    %v1250 = vld [vmem:[#allocation5 + $0x1d8] sm:$0xff]
    %v1251 = vld [vmem:[#allocation5 + $0x1e0] sm:$0xff]
    %v1252 = vld [vmem:[#allocation5 + $0x1e8] sm:$0xff]
    %v1253 = vld [vmem:[#allocation5 + $0x1f0] sm:$0xff]
    %v1254 = vld [vmem:[#allocation5 + $0x1f8] sm:$0xff]
    %v1255 = vld [vmem:[#allocation5 + $0x200] sm:$0xff]
    %v1256 = vld [vmem:[#allocation5 + $0x208] sm:$0xff]
    %v1257 = vld [vmem:[#allocation5 + $0x210] sm:$0xff]
    %v1258 = vld [vmem:[#allocation5 + $0x218] sm:$0xff]
    %v1259 = vld [vmem:[#allocation5 + $0x220] sm:$0xff]
    %v1260 = vld [vmem:[#allocation5 + $0x228] sm:$0xff]
    %v1261 = vld [vmem:[#allocation5 + $0x230] sm:$0xff]
    %v1262 = vld [vmem:[#allocation5 + $0x238] sm:$0xff]
    %v1263 = vld [vmem:[#allocation5 + $0x240] sm:$0xff]
    %v1264 = vld [vmem:[#allocation5 + $0x248] sm:$0xff]
    %v1265 = vld [vmem:[#allocation5 + $0x250] sm:$0xff]
    %v1266 = vld [vmem:[#allocation5 + $0x258] sm:$0xff]
    %v1267 = vld [vmem:[#allocation5 + $0x260] sm:$0xff]
    %v1268 = vld [vmem:[#allocation5 + $0x268] sm:$0xff]
    %v1269 = vld [vmem:[#allocation5 + $0x270] sm:$0xff]
    %v1270 = vld [vmem:[#allocation5 + $0x278] sm:$0xff]
    %v1271 = vld [vmem:[#allocation5 + $0x280] sm:$0xff]
    %v1272 = vld [vmem:[#allocation5 + $0x288] sm:$0xff]
    %v1273 = vld [vmem:[#allocation5 + $0x290] sm:$0xff]
    %v1274 = vld [vmem:[#allocation5 + $0x298] sm:$0xff]
    %v1275 = vld [vmem:[#allocation5 + $0x2a0] sm:$0xff]
    %v1276 = vld [vmem:[#allocation5 + $0x2a8] sm:$0xff]
    %v1277 = vld [vmem:[#allocation5 + $0x2b0] sm:$0xff]
    %v1278 = vld [vmem:[#allocation5 + $0x2b8] sm:$0xff]
    %v1279 = vld [vmem:[#allocation5 + $0x2c0] sm:$0xff]
    %v1280 = vld [vmem:[#allocation5 + $0x2c8] sm:$0xff]
    %v1281 = vld [vmem:[#allocation5 + $0x2d0] sm:$0xff]
    %v1282 = vld [vmem:[#allocation5 + $0x2d8] sm:$0xff]
    %v1283 = vld [vmem:[#allocation5 + $0x2e0] sm:$0xff]
    %v1284 = vld [vmem:[#allocation5 + $0x2e8] sm:$0xff]
    %v1285 = vld [vmem:[#allocation5 + $0x2f0] sm:$0xff]
    %v1286 = vld [vmem:[#allocation5 + $0x2f8] sm:$0xff]
    %v1287 = vld [vmem:[#allocation5 + $0x300] sm:$0xff]
    %v1288 = vld [vmem:[#allocation5 + $0x308] sm:$0xff]
    %v1289 = vld [vmem:[#allocation5 + $0x310] sm:$0xff]
    %v1290 = vld [vmem:[#allocation5 + $0x318] sm:$0xff]
    %v1291 = vld [vmem:[#allocation5 + $0x320] sm:$0xff]
    %v1292 = vld [vmem:[#allocation5 + $0x328] sm:$0xff]
    %v1293 = vld [vmem:[#allocation5 + $0x330] sm:$0xff]
    %v1294 = vld [vmem:[#allocation5 + $0x338] sm:$0xff]
    %v1295 = vld [vmem:[#allocation5 + $0x340] sm:$0xff]
    %v1296 = vld [vmem:[#allocation5 + $0x348] sm:$0xff]
    %v1297 = vld [vmem:[#allocation5 + $0x350] sm:$0xff]
    %v1298 = vld [vmem:[#allocation5 + $0x358] sm:$0xff]
    %v1299 = vld [vmem:[#allocation5 + $0x360] sm:$0xff]
    %v1300 = vld [vmem:[#allocation5 + $0x368] sm:$0xff]
    %v1301 = vld [vmem:[#allocation5 + $0x370] sm:$0xff]
    %v1302 = vld [vmem:[#allocation5 + $0x378] sm:$0xff]
    %v1303 = vld [vmem:[#allocation5 + $0x380] sm:$0xff]
    %v1304 = vld [vmem:[#allocation5 + $0x388] sm:$0xff]
    %v1305 = vld [vmem:[#allocation5 + $0x390] sm:$0xff]
    %v1306 = vld [vmem:[#allocation5 + $0x398] sm:$0xff]
    %v1307 = vld [vmem:[#allocation5 + $0x3a0] sm:$0xff]
    %v1308 = vld [vmem:[#allocation5 + $0x3a8] sm:$0xff]
    %v1309 = vld [vmem:[#allocation5 + $0x3b0] sm:$0xff]
    %v1310 = vld [vmem:[#allocation5 + $0x3b8] sm:$0xff]
    %v1311 = vld [vmem:[#allocation5 + $0x3c0] sm:$0xff]
    %v1312 = vld [vmem:[#allocation5 + $0x3c8] sm:$0xff]
    %v1313 = vld [vmem:[#allocation5 + $0x3d0] sm:$0xff]
    %v1314 = vld [vmem:[#allocation5 + $0x3d8] sm:$0xff]
    %v1315 = vld [vmem:[#allocation5 + $0x3e0] sm:$0xff]
    %v1316 = vld [vmem:[#allocation5 + $0x3e8] sm:$0xff]
    %v1317 = vld [vmem:[#allocation5 + $0x3f0] sm:$0xff]
    %v1318 = vld [vmem:[#allocation5 + $0x3f8] sm:$0xff]
    %v1319 = vld [vmem:[#allocation5 + $0x400] sm:$0xff]
    %v1320 = vld [vmem:[#allocation5 + $0x408] sm:$0xff]
    %v1321 = vld [vmem:[#allocation5 + $0x410] sm:$0xff]
    %v1322 = vld [vmem:[#allocation5 + $0x418] sm:$0xff]
    %v1323 = vld [vmem:[#allocation5 + $0x420] sm:$0xff]
    %v1324 = vld [vmem:[#allocation5 + $0x428] sm:$0xff]
    %v1325 = vld [vmem:[#allocation5 + $0x430] sm:$0xff]
    %v1326 = vld [vmem:[#allocation5 + $0x438] sm:$0xff]
    %v1327 = vld [vmem:[#allocation5 + $0x440] sm:$0xff]
    %v1328 = vld [vmem:[#allocation5 + $0x448] sm:$0xff]
    %v1329 = vld [vmem:[#allocation5 + $0x450] sm:$0xff]
    %v1330 = vld [vmem:[#allocation5 + $0x458] sm:$0xff]
    %v1331 = vld [vmem:[#allocation5 + $0x460] sm:$0xff]
    %v1332 = vld [vmem:[#allocation5 + $0x468] sm:$0xff]
    %v1333 = vld [vmem:[#allocation5 + $0x470] sm:$0xff]
    %v1334 = vld [vmem:[#allocation5 + $0x478] sm:$0xff]
    %v1335 = vld [vmem:[#allocation5 + $0x480] sm:$0xff]
    %v1336 = vld [vmem:[#allocation5 + $0x488] sm:$0xff]
    %v1337 = vld [vmem:[#allocation5 + $0x490] sm:$0xff]
    %v1338 = vld [vmem:[#allocation5 + $0x498] sm:$0xff]
    %v1339 = vld [vmem:[#allocation5 + $0x4a0] sm:$0xff]
    %v1340 = vld [vmem:[#allocation5 + $0x4a8] sm:$0xff]
    %v1341 = vld [vmem:[#allocation5 + $0x4b0] sm:$0xff]
    %v1342 = vld [vmem:[#allocation5 + $0x4b8] sm:$0xff]
    %v1343 = vld [vmem:[#allocation5 + $0x4c0] sm:$0xff]
    %v1344 = vld [vmem:[#allocation5 + $0x4c8] sm:$0xff]
    %v1345 = vld [vmem:[#allocation5 + $0x4d0] sm:$0xff]
    %v1346 = vld [vmem:[#allocation5 + $0x4d8] sm:$0xff]
    %v1347 = vld [vmem:[#allocation5 + $0x4e0] sm:$0xff]
    %v1348 = vld [vmem:[#allocation5 + $0x4e8] sm:$0xff]
    %v1349 = vld [vmem:[#allocation5 + $0x4f0] sm:$0xff]
    %v1350 = vld [vmem:[#allocation5 + $0x4f8] sm:$0xff]
    %v1351 = vld [vmem:[#allocation5 + $0x500] sm:$0xff]
    %v1352 = vld [vmem:[#allocation5 + $0x508] sm:$0xff]
    %v1353 = vld [vmem:[#allocation5 + $0x510] sm:$0xff]
    %v1354 = vld [vmem:[#allocation5 + $0x518] sm:$0xff]
    %v1355 = vld [vmem:[#allocation5 + $0x520] sm:$0xff]
    %v1356 = vld [vmem:[#allocation5 + $0x528] sm:$0xff]
    %v1357 = vld [vmem:[#allocation5 + $0x530] sm:$0xff]
    %v1358 = vld [vmem:[#allocation5 + $0x538] sm:$0xff]
    %v1359 = vld [vmem:[#allocation5 + $0x540] sm:$0xff]
    %v1360 = vld [vmem:[#allocation5 + $0x548] sm:$0xff]
    %v1361 = vld [vmem:[#allocation5 + $0x550] sm:$0xff]
    %v1362 = vld [vmem:[#allocation5 + $0x558] sm:$0xff]
    %v1363 = vld [vmem:[#allocation5 + $0x560] sm:$0xff]
    %v1364 = vld [vmem:[#allocation5 + $0x568] sm:$0xff]
    %v1365 = vld [vmem:[#allocation5 + $0x570] sm:$0xff]
    %v1366 = vld [vmem:[#allocation5 + $0x578] sm:$0xff]
    %v1367 = vld [vmem:[#allocation5 + $0x580] sm:$0xff]
    %v1368 = vld [vmem:[#allocation5 + $0x588] sm:$0xff]
    %v1369 = vld [vmem:[#allocation5 + $0x590] sm:$0xff]
    %v1370 = vld [vmem:[#allocation5 + $0x598] sm:$0xff]
    %v1371 = vld [vmem:[#allocation5 + $0x5a0] sm:$0xff]
    %v1372 = vld [vmem:[#allocation5 + $0x5a8] sm:$0xff]
    %v1373 = vld [vmem:[#allocation5 + $0x5b0] sm:$0xff]
    %v1374 = vld [vmem:[#allocation5 + $0x5b8] sm:$0xff]
    %v1375 = vld [vmem:[#allocation5 + $0x5c0] sm:$0xff]
    %v1376 = vld [vmem:[#allocation5 + $0x5c8] sm:$0xff]
    %v1377 = vld [vmem:[#allocation5 + $0x5d0] sm:$0xff]
    %v1378 = vld [vmem:[#allocation5 + $0x5d8] sm:$0xff]
    %v1379 = vld [vmem:[#allocation5 + $0x5e0] sm:$0xff]
    %v1380 = vld [vmem:[#allocation5 + $0x5e8] sm:$0xff]
    %v1381 = vld [vmem:[#allocation5 + $0x5f0] sm:$0xff]
    %v1382 = vld [vmem:[#allocation5 + $0x5f8] sm:$0xff]
    %v1383 = vld [vmem:[#allocation5 + $0x600] sm:$0xff]
    %v1384 = vld [vmem:[#allocation5 + $0x608] sm:$0xff]
    %v1385 = vld [vmem:[#allocation5 + $0x610] sm:$0xff]
    %v1386 = vld [vmem:[#allocation5 + $0x618] sm:$0xff]
    %v1387 = vld [vmem:[#allocation5 + $0x620] sm:$0xff]
    %v1388 = vld [vmem:[#allocation5 + $0x628] sm:$0xff]
    %v1389 = vld [vmem:[#allocation5 + $0x630] sm:$0xff]
    %v1390 = vld [vmem:[#allocation5 + $0x638] sm:$0xff]
    %v1391 = vld [vmem:[#allocation5 + $0x640] sm:$0xff]
    %v1392 = vld [vmem:[#allocation5 + $0x648] sm:$0xff]
    %v1393 = vld [vmem:[#allocation5 + $0x650] sm:$0xff]
    %v1394 = vld [vmem:[#allocation5 + $0x658] sm:$0xff]
    %v1395 = vld [vmem:[#allocation5 + $0x660] sm:$0xff]
    %v1396 = vld [vmem:[#allocation5 + $0x668] sm:$0xff]
    %v1397 = vld [vmem:[#allocation5 + $0x670] sm:$0xff]
    %v1398 = vld [vmem:[#allocation5 + $0x678] sm:$0xff]
    %v1399 = vld [vmem:[#allocation5 + $0x680] sm:$0xff]
    %v1400 = vld [vmem:[#allocation5 + $0x688] sm:$0xff]
    %v1401 = vld [vmem:[#allocation5 + $0x690] sm:$0xff]
    %v1402 = vld [vmem:[#allocation5 + $0x698] sm:$0xff]
    %v1403 = vld [vmem:[#allocation5 + $0x6a0] sm:$0xff]
    %v1404 = vld [vmem:[#allocation5 + $0x6a8] sm:$0xff]
    %v1405 = vld [vmem:[#allocation5 + $0x6b0] sm:$0xff]
    %v1406 = vld [vmem:[#allocation5 + $0x6b8] sm:$0xff]
    %v1407 = vld [vmem:[#allocation5 + $0x6c0] sm:$0xff]
    %v1408 = vld [vmem:[#allocation5 + $0x6c8] sm:$0xff]
    %v1409 = vld [vmem:[#allocation5 + $0x6d0] sm:$0xff]
    %v1410 = vld [vmem:[#allocation5 + $0x6d8] sm:$0xff]
    %v1411 = vld [vmem:[#allocation5 + $0x6e0] sm:$0xff]
    %v1412 = vld [vmem:[#allocation5 + $0x6e8] sm:$0xff]
    %v1413 = vld [vmem:[#allocation5 + $0x6f0] sm:$0xff]
    %v1414 = vld [vmem:[#allocation5 + $0x6f8] sm:$0xff]
    %v1415 = vld [vmem:[#allocation5 + $0x700] sm:$0xff]
    %v1416 = vld [vmem:[#allocation5 + $0x708] sm:$0xff]
    %v1417 = vld [vmem:[#allocation5 + $0x710] sm:$0xff]
    %v1418 = vld [vmem:[#allocation5 + $0x718] sm:$0xff]
    %v1419 = vld [vmem:[#allocation5 + $0x720] sm:$0xff]
    %v1420 = vld [vmem:[#allocation5 + $0x728] sm:$0xff]
    %v1421 = vld [vmem:[#allocation5 + $0x730] sm:$0xff]
    %v1422 = vld [vmem:[#allocation5 + $0x738] sm:$0xff]
    %v1423 = vld [vmem:[#allocation5 + $0x740] sm:$0xff]
    %v1424 = vld [vmem:[#allocation5 + $0x748] sm:$0xff]
    %v1425 = vld [vmem:[#allocation5 + $0x750] sm:$0xff]
    %v1426 = vld [vmem:[#allocation5 + $0x758] sm:$0xff]
    %v1427 = vld [vmem:[#allocation5 + $0x760] sm:$0xff]
    %v1428 = vld [vmem:[#allocation5 + $0x768] sm:$0xff]
    %v1429 = vld [vmem:[#allocation5 + $0x770] sm:$0xff]
    %v1430 = vld [vmem:[#allocation5 + $0x778] sm:$0xff]
    %v1431 = vld [vmem:[#allocation5 + $0x780] sm:$0xff]
    %v1432 = vld [vmem:[#allocation5 + $0x788] sm:$0xff]
    %v1433 = vld [vmem:[#allocation5 + $0x790] sm:$0xff]
    %v1434 = vld [vmem:[#allocation5 + $0x798] sm:$0xff]
    %v1435 = vld [vmem:[#allocation5 + $0x7a0] sm:$0xff]
    %v1436 = vld [vmem:[#allocation5 + $0x7a8] sm:$0xff]
    %v1437 = vld [vmem:[#allocation5 + $0x7b0] sm:$0xff]
    %v1438 = vld [vmem:[#allocation5 + $0x7b8] sm:$0xff]
    %v1439 = vld [vmem:[#allocation5 + $0x7c0] sm:$0xff]
    %v1440 = vld [vmem:[#allocation5 + $0x7c8] sm:$0xff]
    %v1691 = vunpack.c.l.b16 %v1191
    %v1692 = vunpack.c.h.b16 %v1191
    %v1693 = vunpack.c.l.b16 %v1192
    %v1694 = vunpack.c.h.b16 %v1192
    %v1695 = vunpack.c.l.b16 %v1193
    %v1696 = vunpack.c.h.b16 %v1193
    %v1697 = vunpack.c.l.b16 %v1194
    %v1698 = vunpack.c.h.b16 %v1194
    %v1699 = vunpack.c.l.b16 %v1195
    %v1700 = vunpack.c.h.b16 %v1195
    %v1701 = vunpack.c.l.b16 %v1196
    %v1702 = vunpack.c.h.b16 %v1196
    %v1703 = vunpack.c.l.b16 %v1197
    %v1704 = vunpack.c.h.b16 %v1197
    %v1705 = vunpack.c.l.b16 %v1198
    %v1706 = vunpack.c.h.b16 %v1198
    %v1707 = vunpack.c.l.b16 %v1199
    %v1708 = vunpack.c.h.b16 %v1199
    %v1709 = vunpack.c.l.b16 %v1200
    %v1710 = vunpack.c.h.b16 %v1200
    %v1711 = vunpack.c.l.b16 %v1201
    %v1712 = vunpack.c.h.b16 %v1201
    %v1713 = vunpack.c.l.b16 %v1202
    %v1714 = vunpack.c.h.b16 %v1202
    %v1715 = vunpack.c.l.b16 %v1203
    %v1716 = vunpack.c.h.b16 %v1203
    %v1717 = vunpack.c.l.b16 %v1204
    %v1718 = vunpack.c.h.b16 %v1204
    %v1719 = vunpack.c.l.b16 %v1205
    %v1720 = vunpack.c.h.b16 %v1205
    %v1721 = vunpack.c.l.b16 %v1206
    %v1722 = vunpack.c.h.b16 %v1206
    %v1723 = vunpack.c.l.b16 %v1207
    %v1724 = vunpack.c.h.b16 %v1207
    %v1725 = vunpack.c.l.b16 %v1208
    %v1726 = vunpack.c.h.b16 %v1208
    %v1727 = vunpack.c.l.b16 %v1209
    %v1728 = vunpack.c.h.b16 %v1209
    %v1729 = vunpack.c.l.b16 %v1210
    %v1730 = vunpack.c.h.b16 %v1210
    %v1731 = vunpack.c.l.b16 %v1211
    %v1732 = vunpack.c.h.b16 %v1211
    %v1733 = vunpack.c.l.b16 %v1212
    %v1734 = vunpack.c.h.b16 %v1212
    %v1735 = vunpack.c.l.b16 %v1213
    %v1736 = vunpack.c.h.b16 %v1213
    %v1737 = vunpack.c.l.b16 %v1214
    %v1738 = vunpack.c.h.b16 %v1214
    %v1739 = vunpack.c.l.b16 %v1215
    %v1740 = vunpack.c.h.b16 %v1215
    %v1741 = vunpack.c.l.b16 %v1216
    %v1742 = vunpack.c.h.b16 %v1216
    %v1743 = vunpack.c.l.b16 %v1217
    %v1744 = vunpack.c.h.b16 %v1217
    %v1745 = vunpack.c.l.b16 %v1218
    %v1746 = vunpack.c.h.b16 %v1218
    %v1747 = vunpack.c.l.b16 %v1219
    %v1748 = vunpack.c.h.b16 %v1219
    %v1749 = vunpack.c.l.b16 %v1220
    %v1750 = vunpack.c.h.b16 %v1220
    %v1751 = vunpack.c.l.b16 %v1221
    %v1752 = vunpack.c.h.b16 %v1221
    %v1753 = vunpack.c.l.b16 %v1222
    %v1754 = vunpack.c.h.b16 %v1222
    %v1755 = vunpack.c.l.b16 %v1223
    %v1756 = vunpack.c.h.b16 %v1223
    %v1757 = vunpack.c.l.b16 %v1224
    %v1758 = vunpack.c.h.b16 %v1224
    %v1759 = vunpack.c.l.b16 %v1225
    %v1760 = vunpack.c.h.b16 %v1225
    %v1761 = vunpack.c.l.b16 %v1226
    %v1762 = vunpack.c.h.b16 %v1226
    %v1763 = vunpack.c.l.b16 %v1227
    %v1764 = vunpack.c.h.b16 %v1227
    %v1765 = vunpack.c.l.b16 %v1228
    %v1766 = vunpack.c.h.b16 %v1228
    %v1767 = vunpack.c.l.b16 %v1229
    %v1768 = vunpack.c.h.b16 %v1229
    %v1769 = vunpack.c.l.b16 %v1230
    %v1770 = vunpack.c.h.b16 %v1230
    %v1771 = vunpack.c.l.b16 %v1231
    %v1772 = vunpack.c.h.b16 %v1231
    %v1773 = vunpack.c.l.b16 %v1232
    %v1774 = vunpack.c.h.b16 %v1232
    %v1775 = vunpack.c.l.b16 %v1233
    %v1776 = vunpack.c.h.b16 %v1233
    %v1777 = vunpack.c.l.b16 %v1234
    %v1778 = vunpack.c.h.b16 %v1234
    %v1779 = vunpack.c.l.b16 %v1235
    %v1780 = vunpack.c.h.b16 %v1235
    %v1781 = vunpack.c.l.b16 %v1236
    %v1782 = vunpack.c.h.b16 %v1236
    %v1783 = vunpack.c.l.b16 %v1237
    %v1784 = vunpack.c.h.b16 %v1237
    %v1785 = vunpack.c.l.b16 %v1238
    %v1786 = vunpack.c.h.b16 %v1238
    %v1787 = vunpack.c.l.b16 %v1239
    %v1788 = vunpack.c.h.b16 %v1239
    %v1789 = vunpack.c.l.b16 %v1240
    %v1790 = vunpack.c.h.b16 %v1240
    %v1791 = vunpack.c.l.b16 %v1241
    %v1792 = vunpack.c.h.b16 %v1241
    %v1793 = vunpack.c.l.b16 %v1242
    %v1794 = vunpack.c.h.b16 %v1242
    %v1795 = vunpack.c.l.b16 %v1243
    %v1796 = vunpack.c.h.b16 %v1243
    %v1797 = vunpack.c.l.b16 %v1244
    %v1798 = vunpack.c.h.b16 %v1244
    %v1799 = vunpack.c.l.b16 %v1245
    %v1800 = vunpack.c.h.b16 %v1245
    %v1801 = vunpack.c.l.b16 %v1246
    %v1802 = vunpack.c.h.b16 %v1246
    %v1803 = vunpack.c.l.b16 %v1247
    %v1804 = vunpack.c.h.b16 %v1247
    %v1805 = vunpack.c.l.b16 %v1248
    %v1806 = vunpack.c.h.b16 %v1248
    %v1807 = vunpack.c.l.b16 %v1249
    %v1808 = vunpack.c.h.b16 %v1249
    %v1809 = vunpack.c.l.b16 %v1250
    %v1810 = vunpack.c.h.b16 %v1250
    %v1811 = vunpack.c.l.b16 %v1251
    %v1812 = vunpack.c.h.b16 %v1251
    %v1813 = vunpack.c.l.b16 %v1252
    %v1814 = vunpack.c.h.b16 %v1252
    %v1815 = vunpack.c.l.b16 %v1253
    %v1816 = vunpack.c.h.b16 %v1253
    %v1817 = vunpack.c.l.b16 %v1254
    %v1818 = vunpack.c.h.b16 %v1254
    %v1819 = vunpack.c.l.b16 %v1255
    %v1820 = vunpack.c.h.b16 %v1255
    %v1821 = vunpack.c.l.b16 %v1256
    %v1822 = vunpack.c.h.b16 %v1256
    %v1823 = vunpack.c.l.b16 %v1257
    %v1824 = vunpack.c.h.b16 %v1257
    %v1825 = vunpack.c.l.b16 %v1258
    %v1826 = vunpack.c.h.b16 %v1258
    %v1827 = vunpack.c.l.b16 %v1259
    %v1828 = vunpack.c.h.b16 %v1259
    %v1829 = vunpack.c.l.b16 %v1260
    %v1830 = vunpack.c.h.b16 %v1260
    %v1831 = vunpack.c.l.b16 %v1261
    %v1832 = vunpack.c.h.b16 %v1261
    %v1833 = vunpack.c.l.b16 %v1262
    %v1834 = vunpack.c.h.b16 %v1262
    %v1835 = vunpack.c.l.b16 %v1263
    %v1836 = vunpack.c.h.b16 %v1263
    %v1837 = vunpack.c.l.b16 %v1264
    %v1838 = vunpack.c.h.b16 %v1264
    %v1839 = vunpack.c.l.b16 %v1265
    %v1840 = vunpack.c.h.b16 %v1265
    %v1841 = vunpack.c.l.b16 %v1266
    %v1842 = vunpack.c.h.b16 %v1266
    %v1843 = vunpack.c.l.b16 %v1267
    %v1844 = vunpack.c.h.b16 %v1267
    %v1845 = vunpack.c.l.b16 %v1268
    %v1846 = vunpack.c.h.b16 %v1268
    %v1847 = vunpack.c.l.b16 %v1269
    %v1848 = vunpack.c.h.b16 %v1269
    %v1849 = vunpack.c.l.b16 %v1270
    %v1850 = vunpack.c.h.b16 %v1270
    %v1851 = vunpack.c.l.b16 %v1271
    %v1852 = vunpack.c.h.b16 %v1271
    %v1853 = vunpack.c.l.b16 %v1272
    %v1854 = vunpack.c.h.b16 %v1272
    %v1855 = vunpack.c.l.b16 %v1273
    %v1856 = vunpack.c.h.b16 %v1273
    %v1857 = vunpack.c.l.b16 %v1274
    %v1858 = vunpack.c.h.b16 %v1274
    %v1859 = vunpack.c.l.b16 %v1275
    %v1860 = vunpack.c.h.b16 %v1275
    %v1861 = vunpack.c.l.b16 %v1276
    %v1862 = vunpack.c.h.b16 %v1276
    %v1863 = vunpack.c.l.b16 %v1277
    %v1864 = vunpack.c.h.b16 %v1277
    %v1865 = vunpack.c.l.b16 %v1278
    %v1866 = vunpack.c.h.b16 %v1278
    %v1867 = vunpack.c.l.b16 %v1279
    %v1868 = vunpack.c.h.b16 %v1279
    %v1869 = vunpack.c.l.b16 %v1280
    %v1870 = vunpack.c.h.b16 %v1280
    %v1871 = vunpack.c.l.b16 %v1281
    %v1872 = vunpack.c.h.b16 %v1281
    %v1873 = vunpack.c.l.b16 %v1282
    %v1874 = vunpack.c.h.b16 %v1282
    %v1875 = vunpack.c.l.b16 %v1283
    %v1876 = vunpack.c.h.b16 %v1283
    %v1877 = vunpack.c.l.b16 %v1284
    %v1878 = vunpack.c.h.b16 %v1284
    %v1879 = vunpack.c.l.b16 %v1285
    %v1880 = vunpack.c.h.b16 %v1285
    %v1881 = vunpack.c.l.b16 %v1286
    %v1882 = vunpack.c.h.b16 %v1286
    %v1883 = vunpack.c.l.b16 %v1287
    %v1884 = vunpack.c.h.b16 %v1287
    %v1885 = vunpack.c.l.b16 %v1288
    %v1886 = vunpack.c.h.b16 %v1288
    %v1887 = vunpack.c.l.b16 %v1289
    %v1888 = vunpack.c.h.b16 %v1289
    %v1889 = vunpack.c.l.b16 %v1290
    %v1890 = vunpack.c.h.b16 %v1290
    %v1891 = vunpack.c.l.b16 %v1291
    %v1892 = vunpack.c.h.b16 %v1291
    %v1893 = vunpack.c.l.b16 %v1292
    %v1894 = vunpack.c.h.b16 %v1292
    %v1895 = vunpack.c.l.b16 %v1293
    %v1896 = vunpack.c.h.b16 %v1293
    %v1897 = vunpack.c.l.b16 %v1294
    %v1898 = vunpack.c.h.b16 %v1294
    %v1899 = vunpack.c.l.b16 %v1295
    %v1900 = vunpack.c.h.b16 %v1295
    %v1901 = vunpack.c.l.b16 %v1296
    %v1902 = vunpack.c.h.b16 %v1296
    %v1903 = vunpack.c.l.b16 %v1297
    %v1904 = vunpack.c.h.b16 %v1297
    %v1905 = vunpack.c.l.b16 %v1298
    %v1906 = vunpack.c.h.b16 %v1298
    %v1907 = vunpack.c.l.b16 %v1299
    %v1908 = vunpack.c.h.b16 %v1299
    %v1909 = vunpack.c.l.b16 %v1300
    %v1910 = vunpack.c.h.b16 %v1300
    %v1911 = vunpack.c.l.b16 %v1301
    %v1912 = vunpack.c.h.b16 %v1301
    %v1913 = vunpack.c.l.b16 %v1302
    %v1914 = vunpack.c.h.b16 %v1302
    %v1915 = vunpack.c.l.b16 %v1303
    %v1916 = vunpack.c.h.b16 %v1303
    %v1917 = vunpack.c.l.b16 %v1304
    %v1918 = vunpack.c.h.b16 %v1304
    %v1919 = vunpack.c.l.b16 %v1305
    %v1920 = vunpack.c.h.b16 %v1305
    %v1921 = vunpack.c.l.b16 %v1306
    %v1922 = vunpack.c.h.b16 %v1306
    %v1923 = vunpack.c.l.b16 %v1307
    %v1924 = vunpack.c.h.b16 %v1307
    %v1925 = vunpack.c.l.b16 %v1308
    %v1926 = vunpack.c.h.b16 %v1308
    %v1927 = vunpack.c.l.b16 %v1309
    %v1928 = vunpack.c.h.b16 %v1309
    %v1929 = vunpack.c.l.b16 %v1310
    %v1930 = vunpack.c.h.b16 %v1310
    %v1931 = vunpack.c.l.b16 %v1311
    %v1932 = vunpack.c.h.b16 %v1311
    %v1933 = vunpack.c.l.b16 %v1312
    %v1934 = vunpack.c.h.b16 %v1312
    %v1935 = vunpack.c.l.b16 %v1313
    %v1936 = vunpack.c.h.b16 %v1313
    %v1937 = vunpack.c.l.b16 %v1314
    %v1938 = vunpack.c.h.b16 %v1314
    %v1939 = vunpack.c.l.b16 %v1315
    %v1940 = vunpack.c.h.b16 %v1315
    %v1941 = vunpack.c.l.b16 %v1316
    %v1942 = vunpack.c.h.b16 %v1316
    %v1943 = vunpack.c.l.b16 %v1317
    %v1944 = vunpack.c.h.b16 %v1317
    %v1945 = vunpack.c.l.b16 %v1318
    %v1946 = vunpack.c.h.b16 %v1318
    %v1947 = vunpack.c.l.b16 %v1319
    %v1948 = vunpack.c.h.b16 %v1319
    %v1949 = vunpack.c.l.b16 %v1320
    %v1950 = vunpack.c.h.b16 %v1320
    %v1951 = vunpack.c.l.b16 %v1321
    %v1952 = vunpack.c.h.b16 %v1321
    %v1953 = vunpack.c.l.b16 %v1322
    %v1954 = vunpack.c.h.b16 %v1322
    %v1955 = vunpack.c.l.b16 %v1323
    %v1956 = vunpack.c.h.b16 %v1323
    %v1957 = vunpack.c.l.b16 %v1324
    %v1958 = vunpack.c.h.b16 %v1324
    %v1959 = vunpack.c.l.b16 %v1325
    %v1960 = vunpack.c.h.b16 %v1325
    %v1961 = vunpack.c.l.b16 %v1326
    %v1962 = vunpack.c.h.b16 %v1326
    %v1963 = vunpack.c.l.b16 %v1327
    %v1964 = vunpack.c.h.b16 %v1327
    %v1965 = vunpack.c.l.b16 %v1328
    %v1966 = vunpack.c.h.b16 %v1328
    %v1967 = vunpack.c.l.b16 %v1329
    %v1968 = vunpack.c.h.b16 %v1329
    %v1969 = vunpack.c.l.b16 %v1330
    %v1970 = vunpack.c.h.b16 %v1330
    %v1971 = vunpack.c.l.b16 %v1331
    %v1972 = vunpack.c.h.b16 %v1331
    %v1973 = vunpack.c.l.b16 %v1332
    %v1974 = vunpack.c.h.b16 %v1332
    %v1975 = vunpack.c.l.b16 %v1333
    %v1976 = vunpack.c.h.b16 %v1333
    %v1977 = vunpack.c.l.b16 %v1334
    %v1978 = vunpack.c.h.b16 %v1334
    %v1979 = vunpack.c.l.b16 %v1335
    %v1980 = vunpack.c.h.b16 %v1335
    %v1981 = vunpack.c.l.b16 %v1336
    %v1982 = vunpack.c.h.b16 %v1336
    %v1983 = vunpack.c.l.b16 %v1337
    %v1984 = vunpack.c.h.b16 %v1337
    %v1985 = vunpack.c.l.b16 %v1338
    %v1986 = vunpack.c.h.b16 %v1338
    %v1987 = vunpack.c.l.b16 %v1339
    %v1988 = vunpack.c.h.b16 %v1339
    %v1989 = vunpack.c.l.b16 %v1340
    %v1990 = vunpack.c.h.b16 %v1340
    %v1991 = vunpack.c.l.b16 %v1341
    %v1992 = vunpack.c.h.b16 %v1341
    %v1993 = vunpack.c.l.b16 %v1342
    %v1994 = vunpack.c.h.b16 %v1342
    %v1995 = vunpack.c.l.b16 %v1343
    %v1996 = vunpack.c.h.b16 %v1343
    %v1997 = vunpack.c.l.b16 %v1344
    %v1998 = vunpack.c.h.b16 %v1344
    %v1999 = vunpack.c.l.b16 %v1345
    %v2000 = vunpack.c.h.b16 %v1345
    %v2001 = vunpack.c.l.b16 %v1346
    %v2002 = vunpack.c.h.b16 %v1346
    %v2003 = vunpack.c.l.b16 %v1347
    %v2004 = vunpack.c.h.b16 %v1347
    %v2005 = vunpack.c.l.b16 %v1348
    %v2006 = vunpack.c.h.b16 %v1348
    %v2007 = vunpack.c.l.b16 %v1349
    %v2008 = vunpack.c.h.b16 %v1349
    %v2009 = vunpack.c.l.b16 %v1350
    %v2010 = vunpack.c.h.b16 %v1350
    %v2011 = vunpack.c.l.b16 %v1351
    %v2012 = vunpack.c.h.b16 %v1351
    %v2013 = vunpack.c.l.b16 %v1352
    %v2014 = vunpack.c.h.b16 %v1352
    %v2015 = vunpack.c.l.b16 %v1353
    %v2016 = vunpack.c.h.b16 %v1353
    %v2017 = vunpack.c.l.b16 %v1354
    %v2018 = vunpack.c.h.b16 %v1354
    %v2019 = vunpack.c.l.b16 %v1355
    %v2020 = vunpack.c.h.b16 %v1355
    %v2021 = vunpack.c.l.b16 %v1356
    %v2022 = vunpack.c.h.b16 %v1356
    %v2023 = vunpack.c.l.b16 %v1357
    %v2024 = vunpack.c.h.b16 %v1357
    %v2025 = vunpack.c.l.b16 %v1358
    %v2026 = vunpack.c.h.b16 %v1358
    %v2027 = vunpack.c.l.b16 %v1359
    %v2028 = vunpack.c.h.b16 %v1359
    %v2029 = vunpack.c.l.b16 %v1360
    %v2030 = vunpack.c.h.b16 %v1360
    %v2031 = vunpack.c.l.b16 %v1361
    %v2032 = vunpack.c.h.b16 %v1361
    %v2033 = vunpack.c.l.b16 %v1362
    %v2034 = vunpack.c.h.b16 %v1362
    %v2035 = vunpack.c.l.b16 %v1363
    %v2036 = vunpack.c.h.b16 %v1363
    %v2037 = vunpack.c.l.b16 %v1364
    %v2038 = vunpack.c.h.b16 %v1364
    %v2039 = vunpack.c.l.b16 %v1365
    %v2040 = vunpack.c.h.b16 %v1365
    %v2041 = vunpack.c.l.b16 %v1366
    %v2042 = vunpack.c.h.b16 %v1366
    %v2043 = vunpack.c.l.b16 %v1367
    %v2044 = vunpack.c.h.b16 %v1367
    %v2045 = vunpack.c.l.b16 %v1368
    %v2046 = vunpack.c.h.b16 %v1368
    %v2047 = vunpack.c.l.b16 %v1369
    %v2048 = vunpack.c.h.b16 %v1369
    %v2049 = vunpack.c.l.b16 %v1370
    %v2050 = vunpack.c.h.b16 %v1370
    %v2051 = vunpack.c.l.b16 %v1371
    %v2052 = vunpack.c.h.b16 %v1371
    %v2053 = vunpack.c.l.b16 %v1372
    %v2054 = vunpack.c.h.b16 %v1372
    %v2055 = vunpack.c.l.b16 %v1373
    %v2056 = vunpack.c.h.b16 %v1373
    %v2057 = vunpack.c.l.b16 %v1374
    %v2058 = vunpack.c.h.b16 %v1374
    %v2059 = vunpack.c.l.b16 %v1375
    %v2060 = vunpack.c.h.b16 %v1375
    %v2061 = vunpack.c.l.b16 %v1376
    %v2062 = vunpack.c.h.b16 %v1376
    %v2063 = vunpack.c.l.b16 %v1377
    %v2064 = vunpack.c.h.b16 %v1377
    %v2065 = vunpack.c.l.b16 %v1378
    %v2066 = vunpack.c.h.b16 %v1378
    %v2067 = vunpack.c.l.b16 %v1379
    %v2068 = vunpack.c.h.b16 %v1379
    %v2069 = vunpack.c.l.b16 %v1380
    %v2070 = vunpack.c.h.b16 %v1380
    %v2071 = vunpack.c.l.b16 %v1381
    %v2072 = vunpack.c.h.b16 %v1381
    %v2073 = vunpack.c.l.b16 %v1382
    %v2074 = vunpack.c.h.b16 %v1382
    %v2075 = vunpack.c.l.b16 %v1383
    %v2076 = vunpack.c.h.b16 %v1383
    %v2077 = vunpack.c.l.b16 %v1384
    %v2078 = vunpack.c.h.b16 %v1384
    %v2079 = vunpack.c.l.b16 %v1385
    %v2080 = vunpack.c.h.b16 %v1385
    %v2081 = vunpack.c.l.b16 %v1386
    %v2082 = vunpack.c.h.b16 %v1386
    %v2083 = vunpack.c.l.b16 %v1387
    %v2084 = vunpack.c.h.b16 %v1387
    %v2085 = vunpack.c.l.b16 %v1388
    %v2086 = vunpack.c.h.b16 %v1388
    %v2087 = vunpack.c.l.b16 %v1389
    %v2088 = vunpack.c.h.b16 %v1389
    %v2089 = vunpack.c.l.b16 %v1390
    %v2090 = vunpack.c.h.b16 %v1390
    %v2091 = vunpack.c.l.b16 %v1391
    %v2092 = vunpack.c.h.b16 %v1391
    %v2093 = vunpack.c.l.b16 %v1392
    %v2094 = vunpack.c.h.b16 %v1392
    %v2095 = vunpack.c.l.b16 %v1393
    %v2096 = vunpack.c.h.b16 %v1393
    %v2097 = vunpack.c.l.b16 %v1394
    %v2098 = vunpack.c.h.b16 %v1394
    %v2099 = vunpack.c.l.b16 %v1395
    %v2100 = vunpack.c.h.b16 %v1395
    %v2101 = vunpack.c.l.b16 %v1396
    %v2102 = vunpack.c.h.b16 %v1396
    %v2103 = vunpack.c.l.b16 %v1397
    %v2104 = vunpack.c.h.b16 %v1397
    %v2105 = vunpack.c.l.b16 %v1398
    %v2106 = vunpack.c.h.b16 %v1398
    %v2107 = vunpack.c.l.b16 %v1399
    %v2108 = vunpack.c.h.b16 %v1399
    %v2109 = vunpack.c.l.b16 %v1400
    %v2110 = vunpack.c.h.b16 %v1400
    %v2111 = vunpack.c.l.b16 %v1401
    %v2112 = vunpack.c.h.b16 %v1401
    %v2113 = vunpack.c.l.b16 %v1402
    %v2114 = vunpack.c.h.b16 %v1402
    %v2115 = vunpack.c.l.b16 %v1403
    %v2116 = vunpack.c.h.b16 %v1403
    %v2117 = vunpack.c.l.b16 %v1404
    %v2118 = vunpack.c.h.b16 %v1404
    %v2119 = vunpack.c.l.b16 %v1405
    %v2120 = vunpack.c.h.b16 %v1405
    %v2121 = vunpack.c.l.b16 %v1406
    %v2122 = vunpack.c.h.b16 %v1406
    %v2123 = vunpack.c.l.b16 %v1407
    %v2124 = vunpack.c.h.b16 %v1407
    %v2125 = vunpack.c.l.b16 %v1408
    %v2126 = vunpack.c.h.b16 %v1408
    %v2127 = vunpack.c.l.b16 %v1409
    %v2128 = vunpack.c.h.b16 %v1409
    %v2129 = vunpack.c.l.b16 %v1410
    %v2130 = vunpack.c.h.b16 %v1410
    %v2131 = vunpack.c.l.b16 %v1411
    %v2132 = vunpack.c.h.b16 %v1411
    %v2133 = vunpack.c.l.b16 %v1412
    %v2134 = vunpack.c.h.b16 %v1412
    %v2135 = vunpack.c.l.b16 %v1413
    %v2136 = vunpack.c.h.b16 %v1413
    %v2137 = vunpack.c.l.b16 %v1414
    %v2138 = vunpack.c.h.b16 %v1414
    %v2139 = vunpack.c.l.b16 %v1415
    %v2140 = vunpack.c.h.b16 %v1415
    %v2141 = vunpack.c.l.b16 %v1416
    %v2142 = vunpack.c.h.b16 %v1416
    %v2143 = vunpack.c.l.b16 %v1417
    %v2144 = vunpack.c.h.b16 %v1417
    %v2145 = vunpack.c.l.b16 %v1418
    %v2146 = vunpack.c.h.b16 %v1418
    %v2147 = vunpack.c.l.b16 %v1419
    %v2148 = vunpack.c.h.b16 %v1419
    %v2149 = vunpack.c.l.b16 %v1420
    %v2150 = vunpack.c.h.b16 %v1420
    %v2151 = vunpack.c.l.b16 %v1421
    %v2152 = vunpack.c.h.b16 %v1421
    %v2153 = vunpack.c.l.b16 %v1422
    %v2154 = vunpack.c.h.b16 %v1422
    %v2155 = vunpack.c.l.b16 %v1423
    %v2156 = vunpack.c.h.b16 %v1423
    %v2157 = vunpack.c.l.b16 %v1424
    %v2158 = vunpack.c.h.b16 %v1424
    %v2159 = vunpack.c.l.b16 %v1425
    %v2160 = vunpack.c.h.b16 %v1425
    %v2161 = vunpack.c.l.b16 %v1426
    %v2162 = vunpack.c.h.b16 %v1426
    %v2163 = vunpack.c.l.b16 %v1427
    %v2164 = vunpack.c.h.b16 %v1427
    %v2165 = vunpack.c.l.b16 %v1428
    %v2166 = vunpack.c.h.b16 %v1428
    %v2167 = vunpack.c.l.b16 %v1429
    %v2168 = vunpack.c.h.b16 %v1429
    %v2169 = vunpack.c.l.b16 %v1430
    %v2170 = vunpack.c.h.b16 %v1430
    %v2171 = vunpack.c.l.b16 %v1431
    %v2172 = vunpack.c.h.b16 %v1431
    %v2173 = vunpack.c.l.b16 %v1432
    %v2174 = vunpack.c.h.b16 %v1432
    %v2175 = vunpack.c.l.b16 %v1433
    %v2176 = vunpack.c.h.b16 %v1433
    %v2177 = vunpack.c.l.b16 %v1434
    %v2178 = vunpack.c.h.b16 %v1434
    %v2179 = vunpack.c.l.b16 %v1435
    %v2180 = vunpack.c.h.b16 %v1435
    %v2181 = vunpack.c.l.b16 %v1436
    %v2182 = vunpack.c.h.b16 %v1436
    %v2183 = vunpack.c.l.b16 %v1437
    %v2184 = vunpack.c.h.b16 %v1437
    %v2185 = vunpack.c.l.b16 %v1438
    %v2186 = vunpack.c.h.b16 %v1438
    %v2187 = vunpack.c.l.b16 %v1439
    %v2188 = vunpack.c.h.b16 %v1439
    %v2189 = vunpack.c.l.b16 %v1440
    %v2190 = vunpack.c.h.b16 %v1440
    %v2191 = vpack.c.b16 %v1695, %v1691
    %v2192 = vpack.c.b16 %v1696, %v1692
    %v2193 = vpack.c.b16 %v1697, %v1693
    %v2194 = vpack.c.b16 %v1698, %v1694
    %v2195 = vpack.c.b16 %v1703, %v1699
    %v2196 = vpack.c.b16 %v1704, %v1700
    %v2197 = vpack.c.b16 %v1705, %v1701
    %v2198 = vpack.c.b16 %v1706, %v1702
    %v2199 = vpack.c.b16 %v1711, %v1707
    %v2200 = vpack.c.b16 %v1712, %v1708
    %v2201 = vpack.c.b16 %v1713, %v1709
    %v2202 = vpack.c.b16 %v1714, %v1710
    %v2203 = vpack.c.b16 %v1719, %v1715
    %v2204 = vpack.c.b16 %v1720, %v1716
    %v2205 = vpack.c.b16 %v1721, %v1717
    %v2206 = vpack.c.b16 %v1722, %v1718
    %v2207 = vpack.c.b16 %v1727, %v1723
    %v2208 = vpack.c.b16 %v1728, %v1724
    %v2209 = vpack.c.b16 %v1729, %v1725
    %v2210 = vpack.c.b16 %v1730, %v1726
    %v2211 = vpack.c.b16 %v1735, %v1731
    %v2212 = vpack.c.b16 %v1736, %v1732
    %v2213 = vpack.c.b16 %v1737, %v1733
    %v2214 = vpack.c.b16 %v1738, %v1734
    %v2215 = vpack.c.b16 %v1743, %v1739
    %v2216 = vpack.c.b16 %v1744, %v1740
    %v2217 = vpack.c.b16 %v1745, %v1741
    %v2218 = vpack.c.b16 %v1746, %v1742
    %v2219 = vpack.c.b16 %v1751, %v1747
    %v2220 = vpack.c.b16 %v1752, %v1748
    %v2221 = vpack.c.b16 %v1753, %v1749
    %v2222 = vpack.c.b16 %v1754, %v1750
    %v2223 = vpack.c.b16 %v1759, %v1755
    %v2224 = vpack.c.b16 %v1760, %v1756
    %v2225 = vpack.c.b16 %v1761, %v1757
    %v2226 = vpack.c.b16 %v1762, %v1758
    %v2227 = vpack.c.b16 %v1767, %v1763
    %v2228 = vpack.c.b16 %v1768, %v1764
    %v2229 = vpack.c.b16 %v1769, %v1765
    %v2230 = vpack.c.b16 %v1770, %v1766
    %v2231 = vpack.c.b16 %v1775, %v1771
    %v2232 = vpack.c.b16 %v1776, %v1772
    %v2233 = vpack.c.b16 %v1777, %v1773
    %v2234 = vpack.c.b16 %v1778, %v1774
    %v2235 = vpack.c.b16 %v1783, %v1779
    %v2236 = vpack.c.b16 %v1784, %v1780
    %v2237 = vpack.c.b16 %v1785, %v1781
    %v2238 = vpack.c.b16 %v1786, %v1782
    %v2239 = vpack.c.b16 %v1791, %v1787
    %v2240 = vpack.c.b16 %v1792, %v1788
    %v2241 = vpack.c.b16 %v1793, %v1789
    %v2242 = vpack.c.b16 %v1794, %v1790
    %v2243 = vpack.c.b16 %v1799, %v1795
    %v2244 = vpack.c.b16 %v1800, %v1796
    %v2245 = vpack.c.b16 %v1801, %v1797
    %v2246 = vpack.c.b16 %v1802, %v1798
    %v2247 = vpack.c.b16 %v1807, %v1803
    %v2248 = vpack.c.b16 %v1808, %v1804
    %v2249 = vpack.c.b16 %v1809, %v1805
    %v2250 = vpack.c.b16 %v1810, %v1806
    %v2251 = vpack.c.b16 %v1815, %v1811
    %v2252 = vpack.c.b16 %v1816, %v1812
    %v2253 = vpack.c.b16 %v1817, %v1813
    %v2254 = vpack.c.b16 %v1818, %v1814
    %v2255 = vpack.c.b16 %v1823, %v1819
    %v2256 = vpack.c.b16 %v1824, %v1820
    %v2257 = vpack.c.b16 %v1825, %v1821
    %v2258 = vpack.c.b16 %v1826, %v1822
    %v2259 = vpack.c.b16 %v1831, %v1827
    %v2260 = vpack.c.b16 %v1832, %v1828
    %v2261 = vpack.c.b16 %v1833, %v1829
    %v2262 = vpack.c.b16 %v1834, %v1830
    %v2263 = vpack.c.b16 %v1839, %v1835
    %v2264 = vpack.c.b16 %v1840, %v1836
    %v2265 = vpack.c.b16 %v1841, %v1837
    %v2266 = vpack.c.b16 %v1842, %v1838
    %v2267 = vpack.c.b16 %v1847, %v1843
    %v2268 = vpack.c.b16 %v1848, %v1844
    %v2269 = vpack.c.b16 %v1849, %v1845
    %v2270 = vpack.c.b16 %v1850, %v1846
    %v2271 = vpack.c.b16 %v1855, %v1851
    %v2272 = vpack.c.b16 %v1856, %v1852
    %v2273 = vpack.c.b16 %v1857, %v1853
    %v2274 = vpack.c.b16 %v1858, %v1854
    %v2275 = vpack.c.b16 %v1863, %v1859
    %v2276 = vpack.c.b16 %v1864, %v1860
    %v2277 = vpack.c.b16 %v1865, %v1861
    %v2278 = vpack.c.b16 %v1866, %v1862
    %v2279 = vpack.c.b16 %v1871, %v1867
    %v2280 = vpack.c.b16 %v1872, %v1868
    %v2281 = vpack.c.b16 %v1873, %v1869
    %v2282 = vpack.c.b16 %v1874, %v1870
    %v2283 = vpack.c.b16 %v1879, %v1875
    %v2284 = vpack.c.b16 %v1880, %v1876
    %v2285 = vpack.c.b16 %v1881, %v1877
    %v2286 = vpack.c.b16 %v1882, %v1878
    %v2287 = vpack.c.b16 %v1887, %v1883
    %v2288 = vpack.c.b16 %v1888, %v1884
    %v2289 = vpack.c.b16 %v1889, %v1885
    %v2290 = vpack.c.b16 %v1890, %v1886
    %v2291 = vpack.c.b16 %v1895, %v1891
    %v2292 = vpack.c.b16 %v1896, %v1892
    %v2293 = vpack.c.b16 %v1897, %v1893
    %v2294 = vpack.c.b16 %v1898, %v1894
    %v2295 = vpack.c.b16 %v1903, %v1899
    %v2296 = vpack.c.b16 %v1904, %v1900
    %v2297 = vpack.c.b16 %v1905, %v1901
    %v2298 = vpack.c.b16 %v1906, %v1902
    %v2299 = vpack.c.b16 %v1911, %v1907
    %v2300 = vpack.c.b16 %v1912, %v1908
    %v2301 = vpack.c.b16 %v1913, %v1909
    %v2302 = vpack.c.b16 %v1914, %v1910
    %v2303 = vpack.c.b16 %v1919, %v1915
    %v2304 = vpack.c.b16 %v1920, %v1916
    %v2305 = vpack.c.b16 %v1921, %v1917
    %v2306 = vpack.c.b16 %v1922, %v1918
    %v2307 = vpack.c.b16 %v1927, %v1923
    %v2308 = vpack.c.b16 %v1928, %v1924
    %v2309 = vpack.c.b16 %v1929, %v1925
    %v2310 = vpack.c.b16 %v1930, %v1926
    %v2311 = vpack.c.b16 %v1935, %v1931
    %v2312 = vpack.c.b16 %v1936, %v1932
    %v2313 = vpack.c.b16 %v1937, %v1933
    %v2314 = vpack.c.b16 %v1938, %v1934
    %v2315 = vpack.c.b16 %v1943, %v1939
    %v2316 = vpack.c.b16 %v1944, %v1940
    %v2317 = vpack.c.b16 %v1945, %v1941
    %v2318 = vpack.c.b16 %v1946, %v1942
    %v2319 = vpack.c.b16 %v1951, %v1947
    %v2320 = vpack.c.b16 %v1952, %v1948
    %v2321 = vpack.c.b16 %v1953, %v1949
    %v2322 = vpack.c.b16 %v1954, %v1950
    %v2323 = vpack.c.b16 %v1959, %v1955
    %v2324 = vpack.c.b16 %v1960, %v1956
    %v2325 = vpack.c.b16 %v1961, %v1957
    %v2326 = vpack.c.b16 %v1962, %v1958
    %v2327 = vpack.c.b16 %v1967, %v1963
    %v2328 = vpack.c.b16 %v1968, %v1964
    %v2329 = vpack.c.b16 %v1969, %v1965
    %v2330 = vpack.c.b16 %v1970, %v1966
    %v2331 = vpack.c.b16 %v1975, %v1971
    %v2332 = vpack.c.b16 %v1976, %v1972
    %v2333 = vpack.c.b16 %v1977, %v1973
    %v2334 = vpack.c.b16 %v1978, %v1974
    %v2335 = vpack.c.b16 %v1983, %v1979
    %v2336 = vpack.c.b16 %v1984, %v1980
    %v2337 = vpack.c.b16 %v1985, %v1981
    %v2338 = vpack.c.b16 %v1986, %v1982
    %v2339 = vpack.c.b16 %v1991, %v1987
    %v2340 = vpack.c.b16 %v1992, %v1988
    %v2341 = vpack.c.b16 %v1993, %v1989
    %v2342 = vpack.c.b16 %v1994, %v1990
    %v2343 = vpack.c.b16 %v1999, %v1995
    %v2344 = vpack.c.b16 %v2000, %v1996
    %v2345 = vpack.c.b16 %v2001, %v1997
    %v2346 = vpack.c.b16 %v2002, %v1998
    %v2347 = vpack.c.b16 %v2007, %v2003
    %v2348 = vpack.c.b16 %v2008, %v2004
    %v2349 = vpack.c.b16 %v2009, %v2005
    %v2350 = vpack.c.b16 %v2010, %v2006
    %v2351 = vpack.c.b16 %v2015, %v2011
    %v2352 = vpack.c.b16 %v2016, %v2012
    %v2353 = vpack.c.b16 %v2017, %v2013
    %v2354 = vpack.c.b16 %v2018, %v2014
    %v2355 = vpack.c.b16 %v2023, %v2019
    %v2356 = vpack.c.b16 %v2024, %v2020
    %v2357 = vpack.c.b16 %v2025, %v2021
    %v2358 = vpack.c.b16 %v2026, %v2022
    %v2359 = vpack.c.b16 %v2031, %v2027
    %v2360 = vpack.c.b16 %v2032, %v2028
    %v2361 = vpack.c.b16 %v2033, %v2029
    %v2362 = vpack.c.b16 %v2034, %v2030
    %v2363 = vpack.c.b16 %v2039, %v2035
    %v2364 = vpack.c.b16 %v2040, %v2036
    %v2365 = vpack.c.b16 %v2041, %v2037
    %v2366 = vpack.c.b16 %v2042, %v2038
    %v2367 = vpack.c.b16 %v2047, %v2043
    %v2368 = vpack.c.b16 %v2048, %v2044
    %v2369 = vpack.c.b16 %v2049, %v2045
    %v2370 = vpack.c.b16 %v2050, %v2046
    %v2371 = vpack.c.b16 %v2055, %v2051
    %v2372 = vpack.c.b16 %v2056, %v2052
    %v2373 = vpack.c.b16 %v2057, %v2053
    %v2374 = vpack.c.b16 %v2058, %v2054
    %v2375 = vpack.c.b16 %v2063, %v2059
    %v2376 = vpack.c.b16 %v2064, %v2060
    %v2377 = vpack.c.b16 %v2065, %v2061
    %v2378 = vpack.c.b16 %v2066, %v2062
    %v2379 = vpack.c.b16 %v2071, %v2067
    %v2380 = vpack.c.b16 %v2072, %v2068
    %v2381 = vpack.c.b16 %v2073, %v2069
    %v2382 = vpack.c.b16 %v2074, %v2070
    %v2383 = vpack.c.b16 %v2079, %v2075
    %v2384 = vpack.c.b16 %v2080, %v2076
    %v2385 = vpack.c.b16 %v2081, %v2077
    %v2386 = vpack.c.b16 %v2082, %v2078
    %v2387 = vpack.c.b16 %v2087, %v2083
    %v2388 = vpack.c.b16 %v2088, %v2084
    %v2389 = vpack.c.b16 %v2089, %v2085
    %v2390 = vpack.c.b16 %v2090, %v2086
    %v2391 = vpack.c.b16 %v2095, %v2091
    %v2392 = vpack.c.b16 %v2096, %v2092
    %v2393 = vpack.c.b16 %v2097, %v2093
    %v2394 = vpack.c.b16 %v2098, %v2094
    %v2395 = vpack.c.b16 %v2103, %v2099
    %v2396 = vpack.c.b16 %v2104, %v2100
    %v2397 = vpack.c.b16 %v2105, %v2101
    %v2398 = vpack.c.b16 %v2106, %v2102
    %v2399 = vpack.c.b16 %v2111, %v2107
    %v2400 = vpack.c.b16 %v2112, %v2108
    %v2401 = vpack.c.b16 %v2113, %v2109
    %v2402 = vpack.c.b16 %v2114, %v2110
    %v2403 = vpack.c.b16 %v2119, %v2115
    %v2404 = vpack.c.b16 %v2120, %v2116
    %v2405 = vpack.c.b16 %v2121, %v2117
    %v2406 = vpack.c.b16 %v2122, %v2118
    %v2407 = vpack.c.b16 %v2127, %v2123
    %v2408 = vpack.c.b16 %v2128, %v2124
    %v2409 = vpack.c.b16 %v2129, %v2125
    %v2410 = vpack.c.b16 %v2130, %v2126
    %v2411 = vpack.c.b16 %v2135, %v2131
    %v2412 = vpack.c.b16 %v2136, %v2132
    %v2413 = vpack.c.b16 %v2137, %v2133
    %v2414 = vpack.c.b16 %v2138, %v2134
    %v2415 = vpack.c.b16 %v2143, %v2139
    %v2416 = vpack.c.b16 %v2144, %v2140
    %v2417 = vpack.c.b16 %v2145, %v2141
    %v2418 = vpack.c.b16 %v2146, %v2142
    %v2419 = vpack.c.b16 %v2151, %v2147
    %v2420 = vpack.c.b16 %v2152, %v2148
    %v2421 = vpack.c.b16 %v2153, %v2149
    %v2422 = vpack.c.b16 %v2154, %v2150
    %v2423 = vpack.c.b16 %v2159, %v2155
    %v2424 = vpack.c.b16 %v2160, %v2156
    %v2425 = vpack.c.b16 %v2161, %v2157
    %v2426 = vpack.c.b16 %v2162, %v2158
    %v2427 = vpack.c.b16 %v2167, %v2163
    %v2428 = vpack.c.b16 %v2168, %v2164
    %v2429 = vpack.c.b16 %v2169, %v2165
    %v2430 = vpack.c.b16 %v2170, %v2166
    %v2431 = vpack.c.b16 %v2175, %v2171
    %v2432 = vpack.c.b16 %v2176, %v2172
    %v2433 = vpack.c.b16 %v2177, %v2173
    %v2434 = vpack.c.b16 %v2178, %v2174
    %v2435 = vpack.c.b16 %v2183, %v2179
    %v2436 = vpack.c.b16 %v2184, %v2180
    %v2437 = vpack.c.b16 %v2185, %v2181
    %v2438 = vpack.c.b16 %v2186, %v2182
    %v2439 = vpack.c.b16 %v2187, %v2187
    %v2440 = vpack.c.b16 %v2188, %v2188
    %v2441 = vpack.c.b16 %v2189, %v2189
    %v2442 = vpack.c.b16 %v2190, %v2190
    %vm2691 = vcmask 850944
    %v2693 = vsel %vm2691, %v1190, 0
    %vm2695 = vcmask 1043456
    %v2697 = vsel %vm2695, %v2439, 0
    %v2700 = vsel %vm2695, %v2440, 0
    %v2703 = vsel %vm2695, %v2441, 0
    %v2706 = vsel %vm2695, %v2442, 0
    %2708 = vmatprep.subr.bf16.mxu0 %v2192
    %2709 = vmatpush1.bf16.msra.mxu0 %v2191
    %2710 = vmatprep.subr.bf16.mxu0 %v2196
    %2711 = vmatpush1.bf16.msra.mxu0 %v2195
    %2712 = vmatprep.subr.bf16.mxu0 %v2200
    %2713 = vmatpush1.bf16.msra.mxu0 %v2199
    %2714 = vmatprep.subr.bf16.mxu0 %v2204
    %2715 = vmatpush1.bf16.msra.mxu0 %v2203
    %2716 = vmatprep.subr.bf16.mxu0 %v2208
    %2717 = vmatpush1.bf16.msra.mxu0 %v2207
    %2718 = vmatprep.subr.bf16.mxu0 %v2212
    %2719 = vmatpush1.bf16.msra.mxu0 %v2211
    %2720 = vmatprep.subr.bf16.mxu0 %v2216
    %2721 = vmatpush1.bf16.msra.mxu0 %v2215
    %2722 = vmatprep.subr.bf16.mxu0 %v2220
    %2723 = vmatpush1.bf16.msra.mxu0 %v2219
    %2724 = vmatprep.subr.bf16.mxu0 %v2224
    %2725 = vmatpush1.bf16.msra.mxu0 %v2223
    %2726 = vmatprep.subr.bf16.mxu0 %v2228
    %2727 = vmatpush1.bf16.msra.mxu0 %v2227
    %2728 = vmatprep.subr.bf16.mxu0 %v2232
    %2729 = vmatpush1.bf16.msra.mxu0 %v2231
    %2730 = vmatprep.subr.bf16.mxu0 %v2236
    %2731 = vmatpush1.bf16.msra.mxu0 %v2235
    %2732 = vmatprep.subr.bf16.mxu0 %v2240
    %2733 = vmatpush1.bf16.msra.mxu0 %v2239
    %2734 = vmatprep.subr.bf16.mxu0 %v2244
    %2735 = vmatpush1.bf16.msra.mxu0 %v2243
    %2736 = vmatprep.subr.bf16.mxu0 %v2248
    %2737 = vmatpush1.bf16.msra.mxu0 %v2247
    %2738 = vmatprep.subr.bf16.mxu0 %v2252
    %2739 = vmatpush1.bf16.msra.mxu0 %v2251
    %2740 = vmatprep.mubr.bf16.mxu0 %v1184
    %2741 = vmatmul.mubr.bf16.gmra.mrb[0].mxu0 %v1183
    %v2742 = vpop.f32.mrb[0].mxu0
    %v2743 = vadd.f32 %v149, %v2742
    %v2744 = vpop.f32.mrb[0].mxu0
    %v2745 = vadd.f32 %v151, %v2744
    %v2746 = vpop.f32.mrb[0].mxu0
    %v2747 = vpop.f32.mrb[0].mxu0
    %2748 = vdwg.mxu0
    %2749 = vmatprep.subr.bf16.mxu0 %v2256
    %2750 = vmatpush1.bf16.msra.mxu0 %v2255
    %2751 = vmatprep.subr.bf16.mxu0 %v2260
    %2752 = vmatpush1.bf16.msra.mxu0 %v2259
    %2753 = vmatprep.subr.bf16.mxu0 %v2264
    %2754 = vmatpush1.bf16.msra.mxu0 %v2263
    %2755 = vmatprep.subr.bf16.mxu0 %v2268
    %2756 = vmatpush1.bf16.msra.mxu0 %v2267
    %2757 = vmatprep.subr.bf16.mxu0 %v2272
    %2758 = vmatpush1.bf16.msra.mxu0 %v2271
    %2759 = vmatprep.subr.bf16.mxu0 %v2276
    %2760 = vmatpush1.bf16.msra.mxu0 %v2275
    %2761 = vmatprep.subr.bf16.mxu0 %v2280
    %2762 = vmatpush1.bf16.msra.mxu0 %v2279
    %2763 = vmatprep.subr.bf16.mxu0 %v2284
    %2764 = vmatpush1.bf16.msra.mxu0 %v2283
    %2765 = vmatprep.subr.bf16.mxu0 %v2288
    %2766 = vmatpush1.bf16.msra.mxu0 %v2287
    %2767 = vmatprep.subr.bf16.mxu0 %v2292
    %2768 = vmatpush1.bf16.msra.mxu0 %v2291
    %2769 = vmatprep.subr.bf16.mxu0 %v2296
    %2770 = vmatpush1.bf16.msra.mxu0 %v2295
    %2771 = vmatprep.subr.bf16.mxu0 %v2300
    %2772 = vmatpush1.bf16.msra.mxu0 %v2299
    %2773 = vmatprep.subr.bf16.mxu0 %v2304
    %2774 = vmatpush1.bf16.msra.mxu0 %v2303
    %2775 = vmatprep.subr.bf16.mxu0 %v2308
    %2776 = vmatpush1.bf16.msra.mxu0 %v2307
    %2777 = vmatprep.subr.bf16.mxu0 %v2312
    %2778 = vmatpush1.bf16.msra.mxu0 %v2311
    %2779 = vmatprep.subr.bf16.mxu0 %v2316
    %2780 = vmatpush1.bf16.msra.mxu0 %v2315
    %2781 = vmatprep.mubr.bf16.mxu0 %v1186
    %2782 = vmatmul.mubr.bf16.gmra.mrb[0].mxu0 %v1185
    %v2783 = vpop.f32.mrb[0].mxu0
    %v2784 = vadd.f32 %v2743, %v2783
    %v2785 = vpop.f32.mrb[0].mxu0
    %v2786 = vadd.f32 %v2745, %v2785
    %v2787 = vpop.f32.mrb[0].mxu0
    %v2788 = vpop.f32.mrb[0].mxu0
    %2789 = vdwg.mxu0
    %2790 = vmatprep.subr.bf16.mxu0 %v2320
    %2791 = vmatpush1.bf16.msra.mxu0 %v2319
    %2792 = vmatprep.subr.bf16.mxu0 %v2324
    %2793 = vmatpush1.bf16.msra.mxu0 %v2323
    %2794 = vmatprep.subr.bf16.mxu0 %v2328
    %2795 = vmatpush1.bf16.msra.mxu0 %v2327
    %2796 = vmatprep.subr.bf16.mxu0 %v2332
    %2797 = vmatpush1.bf16.msra.mxu0 %v2331
    %2798 = vmatprep.subr.bf16.mxu0 %v2336
    %2799 = vmatpush1.bf16.msra.mxu0 %v2335
    %2800 = vmatprep.subr.bf16.mxu0 %v2340
    %2801 = vmatpush1.bf16.msra.mxu0 %v2339
    %2802 = vmatprep.subr.bf16.mxu0 %v2344
    %2803 = vmatpush1.bf16.msra.mxu0 %v2343
    %2804 = vmatprep.subr.bf16.mxu0 %v2348
    %2805 = vmatpush1.bf16.msra.mxu0 %v2347
    %2806 = vmatprep.subr.bf16.mxu0 %v2352
    %2807 = vmatpush1.bf16.msra.mxu0 %v2351
    %2808 = vmatprep.subr.bf16.mxu0 %v2356
    %2809 = vmatpush1.bf16.msra.mxu0 %v2355
    %2810 = vmatprep.subr.bf16.mxu0 %v2360
    %2811 = vmatpush1.bf16.msra.mxu0 %v2359
    %2812 = vmatprep.subr.bf16.mxu0 %v2364
    %2813 = vmatpush1.bf16.msra.mxu0 %v2363
    %2814 = vmatprep.subr.bf16.mxu0 %v2368
    %2815 = vmatpush1.bf16.msra.mxu0 %v2367
    %2816 = vmatprep.subr.bf16.mxu0 %v2372
    %2817 = vmatpush1.bf16.msra.mxu0 %v2371
    %2818 = vmatprep.subr.bf16.mxu0 %v2376
    %2819 = vmatpush1.bf16.msra.mxu0 %v2375
    %2820 = vmatprep.subr.bf16.mxu0 %v2380
    %2821 = vmatpush1.bf16.msra.mxu0 %v2379
    %2822 = vmatprep.mubr.bf16.mxu0 %v1188
    %2823 = vmatmul.mubr.bf16.gmra.mrb[0].mxu0 %v1187
    %v2824 = vpop.f32.mrb[0].mxu0
    %v2825 = vadd.f32 %v2784, %v2824
    %v2826 = vpop.f32.mrb[0].mxu0
    %v2827 = vadd.f32 %v2786, %v2826
    %v2828 = vpop.f32.mrb[0].mxu0
    %v2829 = vpop.f32.mrb[0].mxu0
    %2830 = vdwg.mxu0
    %2831 = vmatprep.subr.bf16.mxu0 %v2384
    %2832 = vmatpush1.bf16.msra.mxu0 %v2383
    %2833 = vmatprep.subr.bf16.mxu0 %v2388
    %2834 = vmatpush1.bf16.msra.mxu0 %v2387
    %2835 = vmatprep.subr.bf16.mxu0 %v2392
    %2836 = vmatpush1.bf16.msra.mxu0 %v2391
    %2837 = vmatprep.subr.bf16.mxu0 %v2396
    %2838 = vmatpush1.bf16.msra.mxu0 %v2395
    %2839 = vmatprep.subr.bf16.mxu0 %v2400
    %2840 = vmatpush1.bf16.msra.mxu0 %v2399
    %2841 = vmatprep.subr.bf16.mxu0 %v2404
    %2842 = vmatpush1.bf16.msra.mxu0 %v2403
    %2843 = vmatprep.subr.bf16.mxu0 %v2408
    %2844 = vmatpush1.bf16.msra.mxu0 %v2407
    %2845 = vmatprep.subr.bf16.mxu0 %v2412
    %2846 = vmatpush1.bf16.msra.mxu0 %v2411
    %2847 = vmatprep.subr.bf16.mxu0 %v2416
    %2848 = vmatpush1.bf16.msra.mxu0 %v2415
    %2849 = vmatprep.subr.bf16.mxu0 %v2420
    %2850 = vmatpush1.bf16.msra.mxu0 %v2419
    %2851 = vmatprep.subr.bf16.mxu0 %v2424
    %2852 = vmatpush1.bf16.msra.mxu0 %v2423
    %2853 = vmatprep.subr.bf16.mxu0 %v2428
    %2854 = vmatpush1.bf16.msra.mxu0 %v2427
    %2855 = vmatprep.subr.bf16.mxu0 %v2432
    %2856 = vmatpush1.bf16.msra.mxu0 %v2431
    %2857 = vmatprep.subr.bf16.mxu0 %v2436
    %2858 = vmatpush1.bf16.msra.mxu0 %v2435
    %2859 = vmatprep.subr.bf16.mxu0 %v2700
    %2860 = vmatpush1.bf16.msra.mxu0 %v2697
    %2861 = vmatprep.subr.bf16.mxu0 0
    %2862 = vmatpush1.bf16.msra.mxu0 0
    %2863 = vmatprep.mubr.bf16.mxu0 %v2693
    %2864 = vmatmul.mubr.bf16.gmra.mrb[0].mxu0 %v1189
    %v2865 = vpop.f32.mrb[0].mxu0
    %v2866 = vadd.f32 %v2825, %v2865
    %v2867 = vpop.f32.mrb[0].mxu0
    %v2868 = vadd.f32 %v2827, %v2867
    %v2869 = vpop.f32.mrb[0].mxu0
    %v2870 = vpop.f32.mrb[0].mxu0
    %2871 = vdwg.mxu0
    %2872 = vmatprep.subr.bf16.mxu0 %v2194
    %2873 = vmatpush1.bf16.msra.mxu0 %v2193
    %2874 = vmatprep.subr.bf16.mxu0 %v2198
    %2875 = vmatpush1.bf16.msra.mxu0 %v2197
    %2876 = vmatprep.subr.bf16.mxu0 %v2202
    %2877 = vmatpush1.bf16.msra.mxu0 %v2201
    %2878 = vmatprep.subr.bf16.mxu0 %v2206
    %2879 = vmatpush1.bf16.msra.mxu0 %v2205
    %2880 = vmatprep.subr.bf16.mxu0 %v2210
    %2881 = vmatpush1.bf16.msra.mxu0 %v2209
    %2882 = vmatprep.subr.bf16.mxu0 %v2214
    %2883 = vmatpush1.bf16.msra.mxu0 %v2213
    %2884 = vmatprep.subr.bf16.mxu0 %v2218
    %2885 = vmatpush1.bf16.msra.mxu0 %v2217
    %2886 = vmatprep.subr.bf16.mxu0 %v2222
    %2887 = vmatpush1.bf16.msra.mxu0 %v2221
    %2888 = vmatprep.subr.bf16.mxu0 %v2226
    %2889 = vmatpush1.bf16.msra.mxu0 %v2225
    %2890 = vmatprep.subr.bf16.mxu0 %v2230
    %2891 = vmatpush1.bf16.msra.mxu0 %v2229
    %2892 = vmatprep.subr.bf16.mxu0 %v2234
    %2893 = vmatpush1.bf16.msra.mxu0 %v2233
    %2894 = vmatprep.subr.bf16.mxu0 %v2238
    %2895 = vmatpush1.bf16.msra.mxu0 %v2237
    %2896 = vmatprep.subr.bf16.mxu0 %v2242
    %2897 = vmatpush1.bf16.msra.mxu0 %v2241
    %2898 = vmatprep.subr.bf16.mxu0 %v2246
    %2899 = vmatpush1.bf16.msra.mxu0 %v2245
    %2900 = vmatprep.subr.bf16.mxu0 %v2250
    %2901 = vmatpush1.bf16.msra.mxu0 %v2249
    %2902 = vmatprep.subr.bf16.mxu0 %v2254
    %2903 = vmatpush1.bf16.msra.mxu0 %v2253
    %2904 = vmatprep.mubr.bf16.mxu0 %v1184
    %2905 = vmatmul.mubr.bf16.gmra.mrb[0].mxu0 %v1183
    %v2906 = vpop.f32.mrb[0].mxu0
    %v2907 = vadd.f32 %v190, %v2906
    %v2908 = vpop.f32.mrb[0].mxu0
    %v2909 = vadd.f32 %v192, %v2908
    %v2910 = vpop.f32.mrb[0].mxu0
    %v2911 = vpop.f32.mrb[0].mxu0
    %2912 = vdwg.mxu0
    %2913 = vmatprep.subr.bf16.mxu0 %v2258
    %2914 = vmatpush1.bf16.msra.mxu0 %v2257
    %2915 = vmatprep.subr.bf16.mxu0 %v2262
    %2916 = vmatpush1.bf16.msra.mxu0 %v2261
    %2917 = vmatprep.subr.bf16.mxu0 %v2266
    %2918 = vmatpush1.bf16.msra.mxu0 %v2265
    %2919 = vmatprep.subr.bf16.mxu0 %v2270
    %2920 = vmatpush1.bf16.msra.mxu0 %v2269
    %2921 = vmatprep.subr.bf16.mxu0 %v2274
    %2922 = vmatpush1.bf16.msra.mxu0 %v2273
    %2923 = vmatprep.subr.bf16.mxu0 %v2278
    %2924 = vmatpush1.bf16.msra.mxu0 %v2277
    %2925 = vmatprep.subr.bf16.mxu0 %v2282
    %2926 = vmatpush1.bf16.msra.mxu0 %v2281
    %2927 = vmatprep.subr.bf16.mxu0 %v2286
    %2928 = vmatpush1.bf16.msra.mxu0 %v2285
    %2929 = vmatprep.subr.bf16.mxu0 %v2290
    %2930 = vmatpush1.bf16.msra.mxu0 %v2289
    %2931 = vmatprep.subr.bf16.mxu0 %v2294
    %2932 = vmatpush1.bf16.msra.mxu0 %v2293
    %2933 = vmatprep.subr.bf16.mxu0 %v2298
    %2934 = vmatpush1.bf16.msra.mxu0 %v2297
    %2935 = vmatprep.subr.bf16.mxu0 %v2302
    %2936 = vmatpush1.bf16.msra.mxu0 %v2301
    %2937 = vmatprep.subr.bf16.mxu0 %v2306
    %2938 = vmatpush1.bf16.msra.mxu0 %v2305
    %2939 = vmatprep.subr.bf16.mxu0 %v2310
    %2940 = vmatpush1.bf16.msra.mxu0 %v2309
    %2941 = vmatprep.subr.bf16.mxu0 %v2314
    %2942 = vmatpush1.bf16.msra.mxu0 %v2313
    %2943 = vmatprep.subr.bf16.mxu0 %v2318
    %2944 = vmatpush1.bf16.msra.mxu0 %v2317
    %2945 = vmatprep.mubr.bf16.mxu0 %v1186
    %2946 = vmatmul.mubr.bf16.gmra.mrb[0].mxu0 %v1185
    %v2947 = vpop.f32.mrb[0].mxu0
    %v2948 = vadd.f32 %v2907, %v2947
    %v2949 = vpop.f32.mrb[0].mxu0
    %v2950 = vadd.f32 %v2909, %v2949
    %v2951 = vpop.f32.mrb[0].mxu0
    %v2952 = vpop.f32.mrb[0].mxu0
    %2953 = vdwg.mxu0
    %2954 = vmatprep.subr.bf16.mxu0 %v2322
    %2955 = vmatpush1.bf16.msra.mxu0 %v2321
    %2956 = vmatprep.subr.bf16.mxu0 %v2326
    %2957 = vmatpush1.bf16.msra.mxu0 %v2325
    %2958 = vmatprep.subr.bf16.mxu0 %v2330
    %2959 = vmatpush1.bf16.msra.mxu0 %v2329
    %2960 = vmatprep.subr.bf16.mxu0 %v2334
    %2961 = vmatpush1.bf16.msra.mxu0 %v2333
    %2962 = vmatprep.subr.bf16.mxu0 %v2338
    %2963 = vmatpush1.bf16.msra.mxu0 %v2337
    %2964 = vmatprep.subr.bf16.mxu0 %v2342
    %2965 = vmatpush1.bf16.msra.mxu0 %v2341
    %2966 = vmatprep.subr.bf16.mxu0 %v2346
    %2967 = vmatpush1.bf16.msra.mxu0 %v2345
    %2968 = vmatprep.subr.bf16.mxu0 %v2350
    %2969 = vmatpush1.bf16.msra.mxu0 %v2349
    %2970 = vmatprep.subr.bf16.mxu0 %v2354
    %2971 = vmatpush1.bf16.msra.mxu0 %v2353
    %2972 = vmatprep.subr.bf16.mxu0 %v2358
    %2973 = vmatpush1.bf16.msra.mxu0 %v2357
    %2974 = vmatprep.subr.bf16.mxu0 %v2362
    %2975 = vmatpush1.bf16.msra.mxu0 %v2361
    %2976 = vmatprep.subr.bf16.mxu0 %v2366
    %2977 = vmatpush1.bf16.msra.mxu0 %v2365
    %2978 = vmatprep.subr.bf16.mxu0 %v2370
    %2979 = vmatpush1.bf16.msra.mxu0 %v2369
    %2980 = vmatprep.subr.bf16.mxu0 %v2374
    %2981 = vmatpush1.bf16.msra.mxu0 %v2373
    %2982 = vmatprep.subr.bf16.mxu0 %v2378
    %2983 = vmatpush1.bf16.msra.mxu0 %v2377
    %2984 = vmatprep.subr.bf16.mxu0 %v2382
    %2985 = vmatpush1.bf16.msra.mxu0 %v2381
    %2986 = vmatprep.mubr.bf16.mxu0 %v1188
    %2987 = vmatmul.mubr.bf16.gmra.mrb[0].mxu0 %v1187
    %v2988 = vpop.f32.mrb[0].mxu0
    %v2989 = vadd.f32 %v2948, %v2988
    %v2990 = vpop.f32.mrb[0].mxu0
    %v2991 = vadd.f32 %v2950, %v2990
    %v2992 = vpop.f32.mrb[0].mxu0
    %v2993 = vpop.f32.mrb[0].mxu0
    %2994 = vdwg.mxu0
    %2995 = vmatprep.subr.bf16.mxu0 %v2386
    %2996 = vmatpush1.bf16.msra.mxu0 %v2385
    %2997 = vmatprep.subr.bf16.mxu0 %v2390
    %2998 = vmatpush1.bf16.msra.mxu0 %v2389
    %2999 = vmatprep.subr.bf16.mxu0 %v2394
    %3000 = vmatpush1.bf16.msra.mxu0 %v2393
    %3001 = vmatprep.subr.bf16.mxu0 %v2398
    %3002 = vmatpush1.bf16.msra.mxu0 %v2397
    %3003 = vmatprep.subr.bf16.mxu0 %v2402
    %3004 = vmatpush1.bf16.msra.mxu0 %v2401
    %3005 = vmatprep.subr.bf16.mxu0 %v2406
    %3006 = vmatpush1.bf16.msra.mxu0 %v2405
    %3007 = vmatprep.subr.bf16.mxu0 %v2410
    %3008 = vmatpush1.bf16.msra.mxu0 %v2409
    %3009 = vmatprep.subr.bf16.mxu0 %v2414
    %3010 = vmatpush1.bf16.msra.mxu0 %v2413
    %3011 = vmatprep.subr.bf16.mxu0 %v2418
    %3012 = vmatpush1.bf16.msra.mxu0 %v2417
    %3013 = vmatprep.subr.bf16.mxu0 %v2422
    %3014 = vmatpush1.bf16.msra.mxu0 %v2421
    %3015 = vmatprep.subr.bf16.mxu0 %v2426
    %3016 = vmatpush1.bf16.msra.mxu0 %v2425
    %3017 = vmatprep.subr.bf16.mxu0 %v2430
    %3018 = vmatpush1.bf16.msra.mxu0 %v2429
    %3019 = vmatprep.subr.bf16.mxu0 %v2434
    %3020 = vmatpush1.bf16.msra.mxu0 %v2433
    %3021 = vmatprep.subr.bf16.mxu0 %v2438
    %3022 = vmatpush1.bf16.msra.mxu0 %v2437
    %3023 = vmatprep.subr.bf16.mxu0 %v2706
    %3024 = vmatpush1.bf16.msra.mxu0 %v2703
    %3025 = vmatprep.subr.bf16.mxu0 0
    %3026 = vmatpush1.bf16.msra.mxu0 0
    %3027 = vmatprep.mubr.bf16.mxu0 %v2693
    %3028 = vmatmul.mubr.bf16.gmra.mrb[0].mxu0 %v1189
    %v3029 = vpop.f32.mrb[0].mxu0
    %v3030 = vadd.f32 %v2989, %v3029
    %v3031 = vpop.f32.mrb[0].mxu0
    %v3032 = vadd.f32 %v2991, %v3031
    %v3033 = vpop.f32.mrb[0].mxu0
    %v3034 = vpop.f32.mrb[0].mxu0
    %3035 = vdwg.mxu0
    %v3036 = vld [vmem:[%s6] sm:$0xf]
    %v3038 = vlaneseq
    %v3039 = vshrl.u32 %v3038, 7
    %v3040 = vsub.s32 0, %v3039
    %v3041 = vrot.slane %v3036, %v3040
    %v3042 = vlaneseq
    %v3043 = vshrl.u32 %v3042, 7
    %v3044 = vsub.s32 1, %v3043
    %v3045 = vrot.slane %v3036, %v3044
    %v3046 = vlaneseq
    %v3047 = vshrl.u32 %v3046, 7
    %v3048 = vsub.s32 2, %v3047
    %v3049 = vrot.slane %v3036, %v3048
    %v3050 = vlaneseq
    %v3051 = vshrl.u32 %v3050, 7
    %v3052 = vsub.s32 3, %v3051
    %v3053 = vrot.slane %v3036, %v3052
    %v3058 = vadd.f32 %v2866, %v3041
    %v3059 = vadd.f32 %v2868, %v3045
    %v3060 = vadd.f32 %v3030, %v3049
    %v3061 = vadd.f32 %v3032, %v3053
    %v3062 = vmax.f32 %v3058, 0.0
    %v3063 = vmax.f32 %v3059, 0.0
    %v3064 = vmax.f32 %v3060, 0.0
    %v3065 = vmax.f32 %v3061, 0.0
    %v3066 = vpack.c.bf16 %v3062, %v3062
    %v3067 = vpack.c.bf16 %v3063, %v3063
    %v3068 = vpack.c.bf16 %v3064, %v3064
    %v3069 = vpack.c.bf16 %v3065, %v3065
    %v3070 = vld [vmem:[%s7] sm:$0xf]
    %v3071 = vld [vmem:[%s7 + $0x4] sm:$0xf]
    %v3072 = vld [vmem:[%s7 + $0x8] sm:$0xf]
    %v3073 = vld [vmem:[%s7 + $0xc] sm:$0xf]
    %v3074 = vld [vmem:[%s7 + $0x10] sm:$0xf]
    %v3075 = vld [vmem:[%s7 + $0x14] sm:$0xf]
    %v3076 = vld [vmem:[%s7 + $0x18] sm:$0xf]
    %v3077 = vld [vmem:[%s7 + $0x1c] sm:$0xf]
    %v3078 = vld [vmem:[%s7 + $0x20] sm:$0xf]
    %v3079 = vld [vmem:[%s7 + $0x24] sm:$0xf]
    %v3080 = vld [vmem:[%s7 + $0x28] sm:$0xf]
    %v3081 = vld [vmem:[%s7 + $0x2c] sm:$0xf]
    %v3082 = vld [vmem:[%s7 + $0x30] sm:$0xf]
    %v3083 = vld [vmem:[%s7 + $0x34] sm:$0xf]
    %v3084 = vld [vmem:[%s7 + $0x38] sm:$0xf]
    %v3085 = vld [vmem:[%s7 + $0x3c] sm:$0xf]
    %v3086 = vld [vmem:[%s7 + $0x40] sm:$0xf]
    %v3087 = vld [vmem:[%s7 + $0x44] sm:$0xf]
    %v3088 = vld [vmem:[%s7 + $0x48] sm:$0xf]
    %v3089 = vld [vmem:[%s7 + $0x4c] sm:$0xf]
    %v3090 = vld [vmem:[%s7 + $0x50] sm:$0xf]
    %v3091 = vld [vmem:[%s7 + $0x54] sm:$0xf]
    %v3092 = vld [vmem:[%s7 + $0x58] sm:$0xf]
    %v3093 = vld [vmem:[%s7 + $0x5c] sm:$0xf]
    %v3094 = vld [vmem:[%s7 + $0x60] sm:$0xf]
    %v3095 = vld [vmem:[%s7 + $0x64] sm:$0xf]
    %v3096 = vld [vmem:[%s7 + $0x68] sm:$0xf]
    %v3097 = vld [vmem:[%s7 + $0x6c] sm:$0xf]
    %v3098 = vld [vmem:[%s7 + $0x70] sm:$0xf]
    %v3099 = vld [vmem:[%s7 + $0x74] sm:$0xf]
    %v3100 = vld [vmem:[%s7 + $0x78] sm:$0xf]
    %v3101 = vld [vmem:[%s7 + $0x7c] sm:$0xf]
    %v3102 = vld [vmem:[%s7 + $0x80] sm:$0xf]
    %v3103 = vld [vmem:[%s7 + $0x84] sm:$0xf]
    %v3104 = vld [vmem:[%s7 + $0x88] sm:$0xf]
    %v3105 = vld [vmem:[%s7 + $0x8c] sm:$0xf]
    %v3106 = vld [vmem:[%s7 + $0x90] sm:$0xf]
    %v3107 = vld [vmem:[%s7 + $0x94] sm:$0xf]
    %v3108 = vld [vmem:[%s7 + $0x98] sm:$0xf]
    %v3109 = vld [vmem:[%s7 + $0x9c] sm:$0xf]
    %v3110 = vld [vmem:[%s7 + $0xa0] sm:$0xf]
    %v3111 = vld [vmem:[%s7 + $0xa4] sm:$0xf]
    %v3112 = vld [vmem:[%s7 + $0xa8] sm:$0xf]
    %v3113 = vld [vmem:[%s7 + $0xac] sm:$0xf]
    %v3114 = vld [vmem:[%s7 + $0xb0] sm:$0xf]
    %v3115 = vld [vmem:[%s7 + $0xb4] sm:$0xf]
    %v3116 = vld [vmem:[%s7 + $0xb8] sm:$0xf]
    %v3117 = vld [vmem:[%s7 + $0xbc] sm:$0xf]
    %v3118 = vld [vmem:[%s7 + $0xc0] sm:$0xf]
    %v3119 = vld [vmem:[%s7 + $0xc4] sm:$0xf]
    %v3120 = vld [vmem:[%s7 + $0xc8] sm:$0xf]
    %v3121 = vld [vmem:[%s7 + $0xcc] sm:$0xf]
    %v3122 = vld [vmem:[%s7 + $0xd0] sm:$0xf]
    %v3123 = vld [vmem:[%s7 + $0xd4] sm:$0xf]
    %v3124 = vld [vmem:[%s7 + $0xd8] sm:$0xf]
    %v3125 = vld [vmem:[%s7 + $0xdc] sm:$0xf]
    %v3126 = vld [vmem:[%s7 + $0xe0] sm:$0xf]
    %v3127 = vld [vmem:[%s7 + $0xe4] sm:$0xf]
    %v3128 = vld [vmem:[%s7 + $0xe8] sm:$0xf]
    %v3129 = vld [vmem:[%s7 + $0xec] sm:$0xf]
    %v3130 = vld [vmem:[%s7 + $0xf0] sm:$0xf]
    %v3131 = vld [vmem:[%s7 + $0xf4] sm:$0xf]
    %v3132 = vld [vmem:[%s7 + $0xf8] sm:$0x3]
    %v3133 = vld [vmem:[%s8] sm:$0x1]
    %v3135 = vlaneseq
    %v3136 = vshrl.u32 %v3135, 7
    %v3137 = vsub.s32 0, %v3136
    %v3138 = vrot.slane %v3133, %v3137
    %v3203 = vunpack.c.l.b16 %v3070
    %v3204 = vunpack.c.l.b16 %v3071
    %v3205 = vunpack.c.l.b16 %v3072
    %v3206 = vunpack.c.l.b16 %v3073
    %v3207 = vunpack.c.l.b16 %v3074
    %v3208 = vunpack.c.l.b16 %v3075
    %v3209 = vunpack.c.l.b16 %v3076
    %v3210 = vunpack.c.l.b16 %v3077
    %v3211 = vunpack.c.l.b16 %v3078
    %v3212 = vunpack.c.l.b16 %v3079
    %v3213 = vunpack.c.l.b16 %v3080
    %v3214 = vunpack.c.l.b16 %v3081
    %v3215 = vunpack.c.l.b16 %v3082
    %v3216 = vunpack.c.l.b16 %v3083
    %v3217 = vunpack.c.l.b16 %v3084
    %v3218 = vunpack.c.l.b16 %v3085
    %v3219 = vunpack.c.l.b16 %v3086
    %v3220 = vunpack.c.l.b16 %v3087
    %v3221 = vunpack.c.l.b16 %v3088
    %v3222 = vunpack.c.l.b16 %v3089
    %v3223 = vunpack.c.l.b16 %v3090
    %v3224 = vunpack.c.l.b16 %v3091
    %v3225 = vunpack.c.l.b16 %v3092
    %v3226 = vunpack.c.l.b16 %v3093
    %v3227 = vunpack.c.l.b16 %v3094
    %v3228 = vunpack.c.l.b16 %v3095
    %v3229 = vunpack.c.l.b16 %v3096
    %v3230 = vunpack.c.l.b16 %v3097
    %v3231 = vunpack.c.l.b16 %v3098
    %v3232 = vunpack.c.l.b16 %v3099
    %v3233 = vunpack.c.l.b16 %v3100
    %v3234 = vunpack.c.l.b16 %v3101
    %v3235 = vunpack.c.l.b16 %v3102
    %v3236 = vunpack.c.l.b16 %v3103
    %v3237 = vunpack.c.l.b16 %v3104
    %v3238 = vunpack.c.l.b16 %v3105
    %v3239 = vunpack.c.l.b16 %v3106
    %v3240 = vunpack.c.l.b16 %v3107
    %v3241 = vunpack.c.l.b16 %v3108
    %v3242 = vunpack.c.l.b16 %v3109
    %v3243 = vunpack.c.l.b16 %v3110
    %v3244 = vunpack.c.l.b16 %v3111
    %v3245 = vunpack.c.l.b16 %v3112
    %v3246 = vunpack.c.l.b16 %v3113
    %v3247 = vunpack.c.l.b16 %v3114
    %v3248 = vunpack.c.l.b16 %v3115
    %v3249 = vunpack.c.l.b16 %v3116
    %v3250 = vunpack.c.l.b16 %v3117
    %v3251 = vunpack.c.l.b16 %v3118
    %v3252 = vunpack.c.l.b16 %v3119
    %v3253 = vunpack.c.l.b16 %v3120
    %v3254 = vunpack.c.l.b16 %v3121
    %v3255 = vunpack.c.l.b16 %v3122
    %v3256 = vunpack.c.l.b16 %v3123
    %v3257 = vunpack.c.l.b16 %v3124
    %v3258 = vunpack.c.l.b16 %v3125
    %v3259 = vunpack.c.l.b16 %v3126
    %v3260 = vunpack.c.l.b16 %v3127
    %v3261 = vunpack.c.l.b16 %v3128
    %v3262 = vunpack.c.l.b16 %v3129
    %v3263 = vunpack.c.l.b16 %v3130
    %v3264 = vunpack.c.l.b16 %v3131
    %v3265 = vunpack.c.l.b16 %v3132
    %v3266 = vpack.c.b16 %v3204, %v3203
    %v3267 = vpack.c.b16 %v3206, %v3205
    %v3268 = vpack.c.b16 %v3208, %v3207
    %v3269 = vpack.c.b16 %v3210, %v3209
    %v3270 = vpack.c.b16 %v3212, %v3211
    %v3271 = vpack.c.b16 %v3214, %v3213
    %v3272 = vpack.c.b16 %v3216, %v3215
    %v3273 = vpack.c.b16 %v3218, %v3217
    %v3274 = vpack.c.b16 %v3220, %v3219
    %v3275 = vpack.c.b16 %v3222, %v3221
    %v3276 = vpack.c.b16 %v3224, %v3223
    %v3277 = vpack.c.b16 %v3226, %v3225
    %v3278 = vpack.c.b16 %v3228, %v3227
    %v3279 = vpack.c.b16 %v3230, %v3229
    %v3280 = vpack.c.b16 %v3232, %v3231
    %v3281 = vpack.c.b16 %v3234, %v3233
    %v3282 = vpack.c.b16 %v3236, %v3235
    %v3283 = vpack.c.b16 %v3238, %v3237
    %v3284 = vpack.c.b16 %v3240, %v3239
    %v3285 = vpack.c.b16 %v3242, %v3241
    %v3286 = vpack.c.b16 %v3244, %v3243
    %v3287 = vpack.c.b16 %v3246, %v3245
    %v3288 = vpack.c.b16 %v3248, %v3247
    %v3289 = vpack.c.b16 %v3250, %v3249
    %v3290 = vpack.c.b16 %v3252, %v3251
    %v3291 = vpack.c.b16 %v3254, %v3253
    %v3292 = vpack.c.b16 %v3256, %v3255
    %v3293 = vpack.c.b16 %v3258, %v3257
    %v3294 = vpack.c.b16 %v3260, %v3259
    %v3295 = vpack.c.b16 %v3262, %v3261
    %v3296 = vpack.c.b16 %v3264, %v3263
    %v3297 = vpack.c.b16 %v3265, %v3265
    %v3330 = vsel %vm982, %v3069, 0
    %v3333 = vsel %vm986, %v3297, 0
    %3335 = vmatprep.subr.bf16.mxu0 0
    %3336 = vmatpush1.bf16.msra.mxu0 %v3266
    %3337 = vmatprep.subr.bf16.mxu0 0
    %3338 = vmatpush1.bf16.msra.mxu0 %v3267
    %3339 = vmatprep.subr.bf16.mxu0 0
    %3340 = vmatpush1.bf16.msra.mxu0 %v3268
    %3341 = vmatprep.subr.bf16.mxu0 0
    %3342 = vmatpush1.bf16.msra.mxu0 %v3269
    %3343 = vmatprep.subr.bf16.mxu0 0
    %3344 = vmatpush1.bf16.msra.mxu0 %v3270
    %3345 = vmatprep.subr.bf16.mxu0 0
    %3346 = vmatpush1.bf16.msra.mxu0 %v3271
    %3347 = vmatprep.subr.bf16.mxu0 0
    %3348 = vmatpush1.bf16.msra.mxu0 %v3272
    %3349 = vmatprep.subr.bf16.mxu0 0
    %3350 = vmatpush1.bf16.msra.mxu0 %v3273
    %3351 = vmatprep.subr.bf16.mxu0 0
    %3352 = vmatpush1.bf16.msra.mxu0 %v3274
    %3353 = vmatprep.subr.bf16.mxu0 0
    %3354 = vmatpush1.bf16.msra.mxu0 %v3275
    %3355 = vmatprep.subr.bf16.mxu0 0
    %3356 = vmatpush1.bf16.msra.mxu0 %v3276
    %3357 = vmatprep.subr.bf16.mxu0 0
    %3358 = vmatpush1.bf16.msra.mxu0 %v3277
    %3359 = vmatprep.subr.bf16.mxu0 0
    %3360 = vmatpush1.bf16.msra.mxu0 %v3278
    %3361 = vmatprep.subr.bf16.mxu0 0
    %3362 = vmatpush1.bf16.msra.mxu0 %v3279
    %3363 = vmatprep.subr.bf16.mxu0 0
    %3364 = vmatpush1.bf16.msra.mxu0 %v3280
    %3365 = vmatprep.subr.bf16.mxu0 0
    %3366 = vmatpush1.bf16.msra.mxu0 %v3281
    %3367 = vmatprep.mubr.bf16.mxu0 %v3067
    %3368 = vmatmul.mubr.bf16.gmra.mrb[0].mxu0 %v3066
    %v3369 = vpop.f32.mrb[0].mxu0
    %v3370 = vadd.f32 %v3138, %v3369
    %v3371 = vpop.f32.mrb[0].mxu0
    %v3372 = vpop.f32.mrb[0].mxu0
    %v3373 = vpop.f32.mrb[0].mxu0
    %3374 = vdwg.mxu0
    %3375 = vmatprep.subr.bf16.mxu0 0
    %3376 = vmatpush1.bf16.msra.mxu0 %v3282
    %3377 = vmatprep.subr.bf16.mxu0 0
    %3378 = vmatpush1.bf16.msra.mxu0 %v3283
    %3379 = vmatprep.subr.bf16.mxu0 0
    %3380 = vmatpush1.bf16.msra.mxu0 %v3284
    %3381 = vmatprep.subr.bf16.mxu0 0
    %3382 = vmatpush1.bf16.msra.mxu0 %v3285
    %3383 = vmatprep.subr.bf16.mxu0 0
    %3384 = vmatpush1.bf16.msra.mxu0 %v3286
    %3385 = vmatprep.subr.bf16.mxu0 0
    %3386 = vmatpush1.bf16.msra.mxu0 %v3287
    %3387 = vmatprep.subr.bf16.mxu0 0
    %3388 = vmatpush1.bf16.msra.mxu0 %v3288
    %3389 = vmatprep.subr.bf16.mxu0 0
    %3390 = vmatpush1.bf16.msra.mxu0 %v3289
    %3391 = vmatprep.subr.bf16.mxu0 0
    %3392 = vmatpush1.bf16.msra.mxu0 %v3290
    %3393 = vmatprep.subr.bf16.mxu0 0
    %3394 = vmatpush1.bf16.msra.mxu0 %v3291
    %3395 = vmatprep.subr.bf16.mxu0 0
    %3396 = vmatpush1.bf16.msra.mxu0 %v3292
    %3397 = vmatprep.subr.bf16.mxu0 0
    %3398 = vmatpush1.bf16.msra.mxu0 %v3293
    %3399 = vmatprep.subr.bf16.mxu0 0
    %3400 = vmatpush1.bf16.msra.mxu0 %v3294
    %3401 = vmatprep.subr.bf16.mxu0 0
    %3402 = vmatpush1.bf16.msra.mxu0 %v3295
    %3403 = vmatprep.subr.bf16.mxu0 0
    %3404 = vmatpush1.bf16.msra.mxu0 %v3296
    %3405 = vmatprep.subr.bf16.mxu0 0
    %3406 = vmatpush1.bf16.msra.mxu0 %v3333
    %3407 = vmatprep.mubr.bf16.mxu0 %v3330
    %3408 = vmatmul.mubr.bf16.gmra.mrb[0].mxu0 %v3068
    %v3409 = vpop.f32.mrb[0].mxu0
    %v3410 = vadd.f32 %v3370, %v3409
    %v3411 = vpop.f32.mrb[0].mxu0
    %v3412 = vpop.f32.mrb[0].mxu0
    %v3413 = vpop.f32.mrb[0].mxu0
    %3414 = vdwg.mxu0
    %v3415 = vmax.f32 %v3410, 0.0
    %v3416 = vpack.c.bf16 %v3415, %v3415
    %v3417 = vld [vmem:[%s9] sm:$0xf]
    %v3418 = vld [vmem:[%s9 + $0x4] sm:$0xf]
    %v3419 = vld [vmem:[%s9 + $0x8] sm:$0xf]
    %v3420 = vld [vmem:[%s9 + $0xc] sm:$0xf]
    %v3421 = vld [vmem:[%s9 + $0x10] sm:$0xf]
    %v3422 = vld [vmem:[%s9 + $0x14] sm:$0xf]
    %v3423 = vld [vmem:[%s9 + $0x18] sm:$0xf]
    %v3424 = vld [vmem:[%s9 + $0x1c] sm:$0xf]
    %v3425 = vld [vmem:[%s9 + $0x20] sm:$0xf]
    %v3426 = vld [vmem:[%s9 + $0x24] sm:$0xf]
    %v3427 = vld [vmem:[%s9 + $0x28] sm:$0xf]
    %v3428 = vld [vmem:[%s9 + $0x2c] sm:$0xf]
    %v3429 = vld [vmem:[%s9 + $0x30] sm:$0x3]
    %v3430 = vld [vmem:[%s10] sm:$0x1]
    %v3432 = vlaneseq
    %v3433 = vshrl.u32 %v3432, 7
    %v3434 = vsub.s32 0, %v3433
    %v3435 = vrot.slane %v3430, %v3434
    %v3450 = vunpack.c.l.b16 %v3417
    %v3451 = vunpack.c.l.b16 %v3418
    %v3452 = vunpack.c.l.b16 %v3419
    %v3453 = vunpack.c.l.b16 %v3420
    %v3454 = vunpack.c.l.b16 %v3421
    %v3455 = vunpack.c.l.b16 %v3422
    %v3456 = vunpack.c.l.b16 %v3423
    %v3457 = vunpack.c.l.b16 %v3424
    %v3458 = vunpack.c.l.b16 %v3425
    %v3459 = vunpack.c.l.b16 %v3426
    %v3460 = vunpack.c.l.b16 %v3427
    %v3461 = vunpack.c.l.b16 %v3428
    %v3462 = vunpack.c.l.b16 %v3429
    %v3463 = vpack.c.b16 %v3451, %v3450
    %v3464 = vpack.c.b16 %v3453, %v3452
    %v3465 = vpack.c.b16 %v3455, %v3454
    %v3466 = vpack.c.b16 %v3457, %v3456
    %v3467 = vpack.c.b16 %v3459, %v3458
    %v3468 = vpack.c.b16 %v3461, %v3460
    %v3469 = vpack.c.b16 %v3462, %v3462
    %vm3476 = vcmask 818176
    %v3478 = vsel %vm3476, %v3416, 0
    %v3481 = vsel %vm986, %v3469, 0
    %3483 = vmatprep.subr.bf16.mxu0 0
    %3484 = vmatpush1.bf16.msra.mxu0 %v3463
    %3485 = vmatprep.subr.bf16.mxu0 0
    %3486 = vmatpush1.bf16.msra.mxu0 %v3464
    %3487 = vmatprep.subr.bf16.mxu0 0
    %3488 = vmatpush1.bf16.msra.mxu0 %v3465
    %3489 = vmatprep.subr.bf16.mxu0 0
    %3490 = vmatpush1.bf16.msra.mxu0 %v3466
    %3491 = vmatprep.subr.bf16.mxu0 0
    %3492 = vmatpush1.bf16.msra.mxu0 %v3467
    %3493 = vmatprep.subr.bf16.mxu0 0
    %3494 = vmatpush1.bf16.msra.mxu0 %v3468
    %3495 = vmatprep.subr.bf16.mxu0 0
    %3496 = vmatpush1.bf16.msra.mxu0 %v3481
    %3497 = vmatprep.subr.bf16.mxu0 0
    %3498 = vmatpush1.bf16.msra.mxu0 0
    %3499 = vmatprep.subr.bf16.mxu0 0
    %3500 = vmatpush1.bf16.msra.mxu0 0
    %3501 = vmatprep.subr.bf16.mxu0 0
    %3502 = vmatpush1.bf16.msra.mxu0 0
    %3503 = vmatprep.subr.bf16.mxu0 0
    %3504 = vmatpush1.bf16.msra.mxu0 0
    %3505 = vmatprep.subr.bf16.mxu0 0
    %3506 = vmatpush1.bf16.msra.mxu0 0
    %3507 = vmatprep.subr.bf16.mxu0 0
    %3508 = vmatpush1.bf16.msra.mxu0 0
    %3509 = vmatprep.subr.bf16.mxu0 0
    %3510 = vmatpush1.bf16.msra.mxu0 0
    %3511 = vmatprep.subr.bf16.mxu0 0
    %3512 = vmatpush1.bf16.msra.mxu0 0
    %3513 = vmatprep.subr.bf16.mxu0 0
    %3514 = vmatpush1.bf16.msra.mxu0 0
    %3515 = vmatprep.mubr.bf16.mxu0 0
    %3516 = vmatmul.mubr.bf16.gmra.mrb[0].mxu0 %v3478
    %v3517 = vpop.f32.mrb[0].mxu0
    %v3518 = vadd.f32 %v3435, %v3517
    %v3519 = vpop.f32.mrb[0].mxu0
    %v3520 = vpop.f32.mrb[0].mxu0
    %v3521 = vpop.f32.mrb[0].mxu0
    %3522 = vdwg.mxu0
    %vm3523 = vcmask 121856
    %3524 = vst.msk [vmem:[#allocation7] sm:$0xff] %vm3523, %v3518
    // Predicated region
    $region54: #{survnet2_forward.1} parent=1 // pred_check
      _
    $region55: #{survnet2_forward.1} parent=1 // pred_check_branch
      %3526 = sbr.rel (0) target = $region57
    $region56: #{survnet2_forward.1} parent=1 // pred_region
      %s3528 = ssub.s32 128, 128
      %3529 = vsyncadd [#allocation4], %s3528
      %s3531 = sshll.u32 [#allocation7], 4
      %s3532 = int_to_ptr.vmem [resolvable:$true] %s3531
      %3534 = dma.vmem_to_hbm [thread:$0]  %s3532, 128, %s11, [#allocation4]
    $region57: #{survnet2_forward.1} parent=1 // pred_fallthru
      _
    // Predicated region
    $region58: #{survnet2_forward.1} parent=1 // pred_check
      _
    $region59: #{survnet2_forward.1} parent=1 // pred_check_branch
      %3536 = sbr.rel (0) target = $region61
    $region60: #{survnet2_forward.1} parent=1 // pred_region
      %3537 = dma.done [#allocation4], 128
    $region61: #{survnet2_forward.1} parent=1 // pred_fallthru
      _
    %3538 = vsyncpa [#allocation3], 1
    %3539 = vsyncpa [#allocation6], 1
    %3540 = vsyncpa [#allocation4], 1

</llo_original>
